<compile_context>
chip_gen: v6e
topology: v6e:2x2x1
jax: 0.10.0
libtpu: 0.0.40
codegen_flags: <defaults>
</compile_context>

<pallas_src>
import functools

import jax
import jax.numpy as jnp
from jax.experimental import pallas as pl
from jax.experimental.pallas import tpu as pltpu

UP = 14  # nn.Upsample(scale_factor=14)


def _head_kernel(b_ref, x_ref, w_ref, gw_ref, o_ref):
    # b_ref : (2,)                  f32, SMEM   conv bias
    # x_ref : (1, tH, C, W)         f32, VMEM   input tile (batch-major, H-tiled)
    # w_ref : (2, C)                f32, VMEM   1x1 conv weight
    # gw_ref: (W, UP*W)             f32, VMEM   0/1 nearest-upsample matrix along W
    # o_ref : (1, 2, tH, UP, UP*W)  f32, VMEM   fused conv + x14 upsample output tile
    tile_h = x_ref.shape[1]
    up = o_ref.shape[3]
    up_w = o_ref.shape[4]

    w = w_ref[...]      # (2, C)
    gw = gw_ref[...]    # (W, UP*W)

    # (2, 1) bias column built once from SMEM scalars (hoisted out of the h loop).
    row = jax.lax.broadcasted_iota(jnp.int32, (2, 1), 0)
    bias_col = jnp.where(row == 0, b_ref[0], b_ref[1]).astype(jnp.float32)

    # Short static loop (trace-time unrolled): per output row h,
    #   conv:        y = W @ x[:, h, :]            (2, W)      MXU
    #   W-upsample:  z = y @ GW + b                (2, UP*W)   MXU (pure replication)
    #   H-upsample:  sublane-broadcast z across the UP rows of the output block.
    for h in range(tile_h):
        xh = x_ref[0, h]                                                   # (C, W)
        y = jnp.dot(w, xh, preferred_element_type=jnp.float32)             # (2, W)
        z = jnp.dot(y, gw, preferred_element_type=jnp.float32) + bias_col  # (2, UP*W)
        rep = jnp.broadcast_to(z[:, None, :], (2, up, up_w))               # (2, UP, UP*W)
        o_ref[0, :, h] = rep.astype(o_ref.dtype)


def classification_head_forward(x, weight, bias, *, tile_h=None):
    """ClassificationHead.forward: Conv2d(C->2, 1x1) -> Upsample(x14, nearest) -> squeeze(2).

    x:      (B, C, H, W) float32
    weight: (2, C)       float32   (Conv2d weight (2, C, 1, 1) squeezed)
    bias:   (2,)         float32
    returns (B, 2, 14H, 14W) float32
    """
    B, C, H, W = x.shape
    if tile_h is None:
        tile_h = H
    assert H % tile_h == 0, "tile_h must divide H"

    # (B, H, C, W): each per-row (C, W) slab is a clean leading-dim slice in the kernel.
    # The input is ~196x smaller than the upsampled output, so this transpose is cheap
    # compared with the output writeback the fusion saves.
    xt = jnp.transpose(x, (0, 2, 1, 3))
    w2 = weight.reshape(2, C).astype(jnp.float32)
    b1 = bias.reshape(2).astype(jnp.float32)

    # Constant 0/1 matrix implementing nearest x14 replication along W: gw[w, 14w+dw] = 1.
    cols = jnp.arange(UP * W) // UP
    gw = (cols[None, :] == jnp.arange(W)[:, None]).astype(jnp.float32)    # (W, UP*W)

    grid = (B, H // tile_h)

    # VMEM budget: double-buffered input + output tiles plus resident constants.
    x_blk = tile_h * C * W * 4
    o_blk = 2 * tile_h * UP * UP * W * 4
    const = w2.size * 4 + gw.size * 4
    vmem_limit = int(min(96 * 2**20, max(8 * 2**20, 3 * (x_blk + o_blk) + const + 2**20)))

    flops = 2 * B * 2 * C * H * W + 2 * B * 2 * H * W * UP * W
    bytes_accessed = (xt.size + w2.size + b1.size + gw.size + B * 2 * H * UP * UP * W) * 4

    out5 = pl.pallas_call(
        _head_kernel,
        out_shape=jax.ShapeDtypeStruct((B, 2, H, UP, UP * W), jnp.float32),
        grid_spec=pltpu.PrefetchScalarGridSpec(
            num_scalar_prefetch=0,
            grid=grid,
            in_specs=[
                pl.BlockSpec(memory_space=pltpu.MemorySpace.SMEM),            # bias (2,)
                pl.BlockSpec((1, tile_h, C, W), lambda b, t: (b, t, 0, 0)),   # x tile
                pl.BlockSpec((2, C), lambda b, t: (0, 0)),                    # weight
                pl.BlockSpec((W, UP * W), lambda b, t: (0, 0)),               # GW
            ],
            out_specs=pl.BlockSpec((1, 2, tile_h, UP, UP * W),
                                   lambda b, t: (b, 0, t, 0, 0)),
        ),
        compiler_params=pltpu.CompilerParams(
            dimension_semantics=("parallel", "parallel"),
            vmem_limit_bytes=vmem_limit,
        ),
        cost_estimate=pl.CostEstimate(flops=flops, transcendentals=0,
                                      bytes_accessed=bytes_accessed),
    )(b1, xt, w2, gw)

    # (B, 2, H, 14, 14W) -> (B, 2, 14H, 14W): contiguous merge of adjacent dims, free.
    y = out5.reshape(B, 2, UP * H, UP * W)
    # .squeeze(2) in the PyTorch module only removes dim 2 if it equals 1; 14*H >= 14 -> no-op.
    return y


if __name__ == "__main__":
    key = jax.random.PRNGKey(0)
    k_x, k_w, k_b = jax.random.split(key, 3)

    B, embed_dim, H, W = 2, 32, 16, 16
    x = jax.random.normal(k_x, (B, embed_dim, H, W), dtype=jnp.float32)

    # deterministic synthetic parameters (Conv2d(embed_dim, 2, 1, 1))
    weight = jax.random.normal(k_w, (2, embed_dim), dtype=jnp.float32) * 0.05
    bias = jax.random.normal(k_b, (2,), dtype=jnp.float32) * 0.05

    fwd = jax.jit(functools.partial(classification_head_forward, tile_h=8))
    out = jax.block_until_ready(fwd(x, weight, bias))
    assert out.shape == (B, 2, UP * H, UP * W), out.shape

    # reference check (pure JAX)
    ref_conv = jnp.einsum("oc,bchw->bohw", weight, x) + bias[None, :, None, None]
    ref = jnp.repeat(jnp.repeat(ref_conv, UP, axis=2), UP, axis=3)
    assert jnp.allclose(out, ref, atol=1e-4, rtol=1e-4)

    print("KERNEL_OK")
</pallas_src>

<mosaic_0001>
module attributes {stable_mosaic.version = 11 : i64} {
  func.func @_head_kernel(%arg0: i32, %arg1: i32, %arg2: memref<2xf32, #tpu.memory_space<smem>>, %arg3: memref<1x8x32x16xf32, #tpu.memory_space<vmem>>, %arg4: memref<2x32xf32, #tpu.memory_space<vmem>>, %arg5: memref<16x224xf32, #tpu.memory_space<vmem>>, %arg6: memref<1x2x8x14x224xf32, #tpu.memory_space<vmem>>) attributes {dimension_semantics = [#tpu.dimension_semantics<parallel>, #tpu.dimension_semantics<parallel>], iteration_bounds = array<i64: 2, 2>, scalar_prefetch = 0 : i64, scratch_operands = 0 : i64, tpu.core_type = #tpu.core_type<tc>, window_params = [{transform_indices = @transform_0, window_bounds = array<i64: 2>}, {transform_indices = @transform_1, window_bounds = array<i64: 1, 8, 32, 16>}, {pipeline_mode = #tpu.pipeline_mode<synchronous>, transform_indices = @transform_2, window_bounds = array<i64: 2, 32>}, {pipeline_mode = #tpu.pipeline_mode<synchronous>, transform_indices = @transform_3, window_bounds = array<i64: 16, 224>}, {transform_indices = @transform_4, window_bounds = array<i64: 1, 2, 8, 14, 224>}]} {
    %c0 = arith.constant 0 : index
    %c0_0 = arith.constant 0 : index
    %0 = vector.load %arg4[%c0, %c0_0] : memref<2x32xf32, #tpu.memory_space<vmem>>, vector<2x32xf32>
    %c0_1 = arith.constant 0 : index
    %c0_2 = arith.constant 0 : index
    %1 = vector.load %arg5[%c0_1, %c0_2] : memref<16x224xf32, #tpu.memory_space<vmem>>, vector<16x224xf32>
    %2 = tpu.iota {dimensions = array<i32: 0>} : vector<2x1xi32>
    %c0_i32 = arith.constant 0 : i32
    %3 = vector.broadcast %c0_i32 : i32 to vector<2x1xi32>
    %4 = arith.cmpi eq, %2, %3 : vector<2x1xi32>
    %c0_3 = arith.constant 0 : index
    %5 = memref.load %arg2[%c0_3] : memref<2xf32, #tpu.memory_space<smem>>
    %c1 = arith.constant 1 : index
    %6 = memref.load %arg2[%c1] : memref<2xf32, #tpu.memory_space<smem>>
    %7 = vector.broadcast %5 : f32 to vector<2x1xf32>
    %8 = vector.broadcast %6 : f32 to vector<2x1xf32>
    %9 = arith.select %4, %7, %8 : vector<2x1xi1>, vector<2x1xf32>
    %c0_4 = arith.constant 0 : index
    %c0_5 = arith.constant 0 : index
    %c0_6 = arith.constant 0 : index
    %c0_7 = arith.constant 0 : index
    %10 = vector.load %arg3[%c0_4, %c0_5, %c0_6, %c0_7] : memref<1x8x32x16xf32, #tpu.memory_space<vmem>>, vector<1x1x32x16xf32>
    %11 = vector.shape_cast %10 : vector<1x1x32x16xf32> to vector<32x16xf32>
    %cst = arith.constant dense<0.000000e+00> : vector<2x16xf32>
    %12 = tpu.matmul %0, %11, %cst {dimension_numbers = #tpu.dot_dimension_numbers<[1], [0], [0], [1], [0, 0, 1, 1], [], []>} : vector<2x32xf32>, vector<32x16xf32>, vector<2x16xf32> -> vector<2x16xf32>
    %cst_8 = arith.constant dense<0.000000e+00> : vector<2x224xf32>
    %13 = tpu.matmul %12, %1, %cst_8 {dimension_numbers = #tpu.dot_dimension_numbers<[1], [0], [0], [1], [0, 0, 1, 1], [], []>} : vector<2x16xf32>, vector<16x224xf32>, vector<2x224xf32> -> vector<2x224xf32>
    %14 = vector.broadcast %9 : vector<2x1xf32> to vector<2x224xf32>
    %15 = arith.addf %13, %14 : vector<2x224xf32>
    %16 = vector.shape_cast %15 : vector<2x224xf32> to vector<2x1x224xf32>
    %17 = vector.shape_cast %16 : vector<2x1x224xf32> to vector<2x1x224xf32>
    %18 = vector.broadcast %17 : vector<2x1x224xf32> to vector<2x14x224xf32>
    %c0_9 = arith.constant 0 : index
    %c0_10 = arith.constant 0 : index
    %c0_11 = arith.constant 0 : index
    %c0_12 = arith.constant 0 : index
    %c0_13 = arith.constant 0 : index
    %19 = vector.load %arg6[%c0_9, %c0_10, %c0_11, %c0_12, %c0_13] : memref<1x2x8x14x224xf32, #tpu.memory_space<vmem>>, vector<1x2x1x14x224xf32>
    %20 = vector.shape_cast %19 : vector<1x2x1x14x224xf32> to vector<2x14x224xf32>
    %21 = vector.shape_cast %18 : vector<2x14x224xf32> to vector<1x2x1x14x224xf32>
    tpu.vector_store %arg6[%c0_9, %c0_10, %c0_11, %c0_12, %c0_13], %21 {strides = array<i32>} : memref<1x2x8x14x224xf32, #tpu.memory_space<vmem>>, vector<1x2x1x14x224xf32>,
    %c0_14 = arith.constant 0 : index
    %c1_15 = arith.constant 1 : index
    %c0_16 = arith.constant 0 : index
    %c0_17 = arith.constant 0 : index
    %22 = vector.load %arg3[%c0_14, %c1_15, %c0_16, %c0_17] : memref<1x8x32x16xf32, #tpu.memory_space<vmem>>, vector<1x1x32x16xf32>
    %23 = vector.shape_cast %22 : vector<1x1x32x16xf32> to vector<32x16xf32>
    %cst_18 = arith.constant dense<0.000000e+00> : vector<2x16xf32>
    %24 = tpu.matmul %0, %23, %cst_18 {dimension_numbers = #tpu.dot_dimension_numbers<[1], [0], [0], [1], [0, 0, 1, 1], [], []>} : vector<2x32xf32>, vector<32x16xf32>, vector<2x16xf32> -> vector<2x16xf32>
    %cst_19 = arith.constant dense<0.000000e+00> : vector<2x224xf32>
    %25 = tpu.matmul %24, %1, %cst_19 {dimension_numbers = #tpu.dot_dimension_numbers<[1], [0], [0], [1], [0, 0, 1, 1], [], []>} : vector<2x16xf32>, vector<16x224xf32>, vector<2x224xf32> -> vector<2x224xf32>
    %26 = vector.broadcast %9 : vector<2x1xf32> to vector<2x224xf32>
    %27 = arith.addf %25, %26 : vector<2x224xf32>
    %28 = vector.shape_cast %27 : vector<2x224xf32> to vector<2x1x224xf32>
    %29 = vector.shape_cast %28 : vector<2x1x224xf32> to vector<2x1x224xf32>
    %30 = vector.broadcast %29 : vector<2x1x224xf32> to vector<2x14x224xf32>
    %c0_20 = arith.constant 0 : index
    %c0_21 = arith.constant 0 : index
    %c1_22 = arith.constant 1 : index
    %c0_23 = arith.constant 0 : index
    %c0_24 = arith.constant 0 : index
    %31 = vector.load %arg6[%c0_20, %c0_21, %c1_22, %c0_23, %c0_24] : memref<1x2x8x14x224xf32, #tpu.memory_space<vmem>>, vector<1x2x1x14x224xf32>
    %32 = vector.shape_cast %31 : vector<1x2x1x14x224xf32> to vector<2x14x224xf32>
    %33 = vector.shape_cast %30 : vector<2x14x224xf32> to vector<1x2x1x14x224xf32>
    tpu.vector_store %arg6[%c0_20, %c0_21, %c1_22, %c0_23, %c0_24], %33 {strides = array<i32>} : memref<1x2x8x14x224xf32, #tpu.memory_space<vmem>>, vector<1x2x1x14x224xf32>,
    %c0_25 = arith.constant 0 : index
    %c2 = arith.constant 2 : index
    %c0_26 = arith.constant 0 : index
    %c0_27 = arith.constant 0 : index
    %34 = vector.load %arg3[%c0_25, %c2, %c0_26, %c0_27] : memref<1x8x32x16xf32, #tpu.memory_space<vmem>>, vector<1x1x32x16xf32>
    %35 = vector.shape_cast %34 : vector<1x1x32x16xf32> to vector<32x16xf32>
    %cst_28 = arith.constant dense<0.000000e+00> : vector<2x16xf32>
    %36 = tpu.matmul %0, %35, %cst_28 {dimension_numbers = #tpu.dot_dimension_numbers<[1], [0], [0], [1], [0, 0, 1, 1], [], []>} : vector<2x32xf32>, vector<32x16xf32>, vector<2x16xf32> -> vector<2x16xf32>
    %cst_29 = arith.constant dense<0.000000e+00> : vector<2x224xf32>
    %37 = tpu.matmul %36, %1, %cst_29 {dimension_numbers = #tpu.dot_dimension_numbers<[1], [0], [0], [1], [0, 0, 1, 1], [], []>} : vector<2x16xf32>, vector<16x224xf32>, vector<2x224xf32> -> vector<2x224xf32>
    %38 = vector.broadcast %9 : vector<2x1xf32> to vector<2x224xf32>
    %39 = arith.addf %37, %38 : vector<2x224xf32>
    %40 = vector.shape_cast %39 : vector<2x224xf32> to vector<2x1x224xf32>
    %41 = vector.shape_cast %40 : vector<2x1x224xf32> to vector<2x1x224xf32>
    %42 = vector.broadcast %41 : vector<2x1x224xf32> to vector<2x14x224xf32>
    %c0_30 = arith.constant 0 : index
    %c0_31 = arith.constant 0 : index
    %c2_32 = arith.constant 2 : index
    %c0_33 = arith.constant 0 : index
    %c0_34 = arith.constant 0 : index
    %43 = vector.load %arg6[%c0_30, %c0_31, %c2_32, %c0_33, %c0_34] : memref<1x2x8x14x224xf32, #tpu.memory_space<vmem>>, vector<1x2x1x14x224xf32>
    %44 = vector.shape_cast %43 : vector<1x2x1x14x224xf32> to vector<2x14x224xf32>
    %45 = vector.shape_cast %42 : vector<2x14x224xf32> to vector<1x2x1x14x224xf32>
    tpu.vector_store %arg6[%c0_30, %c0_31, %c2_32, %c0_33, %c0_34], %45 {strides = array<i32>} : memref<1x2x8x14x224xf32, #tpu.memory_space<vmem>>, vector<1x2x1x14x224xf32>,
    %c0_35 = arith.constant 0 : index
    %c3 = arith.constant 3 : index
    %c0_36 = arith.constant 0 : index
    %c0_37 = arith.constant 0 : index
    %46 = vector.load %arg3[%c0_35, %c3, %c0_36, %c0_37] : memref<1x8x32x16xf32, #tpu.memory_space<vmem>>, vector<1x1x32x16xf32>
    %47 = vector.shape_cast %46 : vector<1x1x32x16xf32> to vector<32x16xf32>
    %cst_38 = arith.constant dense<0.000000e+00> : vector<2x16xf32>
    %48 = tpu.matmul %0, %47, %cst_38 {dimension_numbers = #tpu.dot_dimension_numbers<[1], [0], [0], [1], [0, 0, 1, 1], [], []>} : vector<2x32xf32>, vector<32x16xf32>, vector<2x16xf32> -> vector<2x16xf32>
    %cst_39 = arith.constant dense<0.000000e+00> : vector<2x224xf32>
    %49 = tpu.matmul %48, %1, %cst_39 {dimension_numbers = #tpu.dot_dimension_numbers<[1], [0], [0], [1], [0, 0, 1, 1], [], []>} : vector<2x16xf32>, vector<16x224xf32>, vector<2x224xf32> -> vector<2x224xf32>
    %50 = vector.broadcast %9 : vector<2x1xf32> to vector<2x224xf32>
    %51 = arith.addf %49, %50 : vector<2x224xf32>
    %52 = vector.shape_cast %51 : vector<2x224xf32> to vector<2x1x224xf32>
    %53 = vector.shape_cast %52 : vector<2x1x224xf32> to vector<2x1x224xf32>
    %54 = vector.broadcast %53 : vector<2x1x224xf32> to vector<2x14x224xf32>
    %c0_40 = arith.constant 0 : index
    %c0_41 = arith.constant 0 : index
    %c3_42 = arith.constant 3 : index
    %c0_43 = arith.constant 0 : index
    %c0_44 = arith.constant 0 : index
    %55 = vector.load %arg6[%c0_40, %c0_41, %c3_42, %c0_43, %c0_44] : memref<1x2x8x14x224xf32, #tpu.memory_space<vmem>>, vector<1x2x1x14x224xf32>
    %56 = vector.shape_cast %55 : vector<1x2x1x14x224xf32> to vector<2x14x224xf32>
    %57 = vector.shape_cast %54 : vector<2x14x224xf32> to vector<1x2x1x14x224xf32>
    tpu.vector_store %arg6[%c0_40, %c0_41, %c3_42, %c0_43, %c0_44], %57 {strides = array<i32>} : memref<1x2x8x14x224xf32, #tpu.memory_space<vmem>>, vector<1x2x1x14x224xf32>,
    %c0_45 = arith.constant 0 : index
    %c4 = arith.constant 4 : index
    %c0_46 = arith.constant 0 : index
    %c0_47 = arith.constant 0 : index
    %58 = vector.load %arg3[%c0_45, %c4, %c0_46, %c0_47] : memref<1x8x32x16xf32, #tpu.memory_space<vmem>>, vector<1x1x32x16xf32>
    %59 = vector.shape_cast %58 : vector<1x1x32x16xf32> to vector<32x16xf32>
    %cst_48 = arith.constant dense<0.000000e+00> : vector<2x16xf32>
    %60 = tpu.matmul %0, %59, %cst_48 {dimension_numbers = #tpu.dot_dimension_numbers<[1], [0], [0], [1], [0, 0, 1, 1], [], []>} : vector<2x32xf32>, vector<32x16xf32>, vector<2x16xf32> -> vector<2x16xf32>
    %cst_49 = arith.constant dense<0.000000e+00> : vector<2x224xf32>
    %61 = tpu.matmul %60, %1, %cst_49 {dimension_numbers = #tpu.dot_dimension_numbers<[1], [0], [0], [1], [0, 0, 1, 1], [], []>} : vector<2x16xf32>, vector<16x224xf32>, vector<2x224xf32> -> vector<2x224xf32>
    %62 = vector.broadcast %9 : vector<2x1xf32> to vector<2x224xf32>
    %63 = arith.addf %61, %62 : vector<2x224xf32>
    %64 = vector.shape_cast %63 : vector<2x224xf32> to vector<2x1x224xf32>
    %65 = vector.shape_cast %64 : vector<2x1x224xf32> to vector<2x1x224xf32>
    %66 = vector.broadcast %65 : vector<2x1x224xf32> to vector<2x14x224xf32>
    %c0_50 = arith.constant 0 : index
    %c0_51 = arith.constant 0 : index
    %c4_52 = arith.constant 4 : index
    %c0_53 = arith.constant 0 : index
    %c0_54 = arith.constant 0 : index
    %67 = vector.load %arg6[%c0_50, %c0_51, %c4_52, %c0_53, %c0_54] : memref<1x2x8x14x224xf32, #tpu.memory_space<vmem>>, vector<1x2x1x14x224xf32>
    %68 = vector.shape_cast %67 : vector<1x2x1x14x224xf32> to vector<2x14x224xf32>
    %69 = vector.shape_cast %66 : vector<2x14x224xf32> to vector<1x2x1x14x224xf32>
    tpu.vector_store %arg6[%c0_50, %c0_51, %c4_52, %c0_53, %c0_54], %69 {strides = array<i32>} : memref<1x2x8x14x224xf32, #tpu.memory_space<vmem>>, vector<1x2x1x14x224xf32>,
    %c0_55 = arith.constant 0 : index
    %c5 = arith.constant 5 : index
    %c0_56 = arith.constant 0 : index
    %c0_57 = arith.constant 0 : index
    %70 = vector.load %arg3[%c0_55, %c5, %c0_56, %c0_57] : memref<1x8x32x16xf32, #tpu.memory_space<vmem>>, vector<1x1x32x16xf32>
    %71 = vector.shape_cast %70 : vector<1x1x32x16xf32> to vector<32x16xf32>
    %cst_58 = arith.constant dense<0.000000e+00> : vector<2x16xf32>
    %72 = tpu.matmul %0, %71, %cst_58 {dimension_numbers = #tpu.dot_dimension_numbers<[1], [0], [0], [1], [0, 0, 1, 1], [], []>} : vector<2x32xf32>, vector<32x16xf32>, vector<2x16xf32> -> vector<2x16xf32>
    %cst_59 = arith.constant dense<0.000000e+00> : vector<2x224xf32>
    %73 = tpu.matmul %72, %1, %cst_59 {dimension_numbers = #tpu.dot_dimension_numbers<[1], [0], [0], [1], [0, 0, 1, 1], [], []>} : vector<2x16xf32>, vector<16x224xf32>, vector<2x224xf32> -> vector<2x224xf32>
    %74 = vector.broadcast %9 : vector<2x1xf32> to vector<2x224xf32>
    %75 = arith.addf %73, %74 : vector<2x224xf32>
    %76 = vector.shape_cast %75 : vector<2x224xf32> to vector<2x1x224xf32>
    %77 = vector.shape_cast %76 : vector<2x1x224xf32> to vector<2x1x224xf32>
    %78 = vector.broadcast %77 : vector<2x1x224xf32> to vector<2x14x224xf32>
    %c0_60 = arith.constant 0 : index
    %c0_61 = arith.constant 0 : index
    %c5_62 = arith.constant 5 : index
    %c0_63 = arith.constant 0 : index
    %c0_64 = arith.constant 0 : index
    %79 = vector.load %arg6[%c0_60, %c0_61, %c5_62, %c0_63, %c0_64] : memref<1x2x8x14x224xf32, #tpu.memory_space<vmem>>, vector<1x2x1x14x224xf32>
    %80 = vector.shape_cast %79 : vector<1x2x1x14x224xf32> to vector<2x14x224xf32>
    %81 = vector.shape_cast %78 : vector<2x14x224xf32> to vector<1x2x1x14x224xf32>
    tpu.vector_store %arg6[%c0_60, %c0_61, %c5_62, %c0_63, %c0_64], %81 {strides = array<i32>} : memref<1x2x8x14x224xf32, #tpu.memory_space<vmem>>, vector<1x2x1x14x224xf32>,
    %c0_65 = arith.constant 0 : index
    %c6 = arith.constant 6 : index
    %c0_66 = arith.constant 0 : index
    %c0_67 = arith.constant 0 : index
    %82 = vector.load %arg3[%c0_65, %c6, %c0_66, %c0_67] : memref<1x8x32x16xf32, #tpu.memory_space<vmem>>, vector<1x1x32x16xf32>
    %83 = vector.shape_cast %82 : vector<1x1x32x16xf32> to vector<32x16xf32>
    %cst_68 = arith.constant dense<0.000000e+00> : vector<2x16xf32>
    %84 = tpu.matmul %0, %83, %cst_68 {dimension_numbers = #tpu.dot_dimension_numbers<[1], [0], [0], [1], [0, 0, 1, 1], [], []>} : vector<2x32xf32>, vector<32x16xf32>, vector<2x16xf32> -> vector<2x16xf32>
    %cst_69 = arith.constant dense<0.000000e+00> : vector<2x224xf32>
    %85 = tpu.matmul %84, %1, %cst_69 {dimension_numbers = #tpu.dot_dimension_numbers<[1], [0], [0], [1], [0, 0, 1, 1], [], []>} : vector<2x16xf32>, vector<16x224xf32>, vector<2x224xf32> -> vector<2x224xf32>
    %86 = vector.broadcast %9 : vector<2x1xf32> to vector<2x224xf32>
    %87 = arith.addf %85, %86 : vector<2x224xf32>
    %88 = vector.shape_cast %87 : vector<2x224xf32> to vector<2x1x224xf32>
    %89 = vector.shape_cast %88 : vector<2x1x224xf32> to vector<2x1x224xf32>
    %90 = vector.broadcast %89 : vector<2x1x224xf32> to vector<2x14x224xf32>
    %c0_70 = arith.constant 0 : index
    %c0_71 = arith.constant 0 : index
    %c6_72 = arith.constant 6 : index
    %c0_73 = arith.constant 0 : index
    %c0_74 = arith.constant 0 : index
    %91 = vector.load %arg6[%c0_70, %c0_71, %c6_72, %c0_73, %c0_74] : memref<1x2x8x14x224xf32, #tpu.memory_space<vmem>>, vector<1x2x1x14x224xf32>
    %92 = vector.shape_cast %91 : vector<1x2x1x14x224xf32> to vector<2x14x224xf32>
    %93 = vector.shape_cast %90 : vector<2x14x224xf32> to vector<1x2x1x14x224xf32>
    tpu.vector_store %arg6[%c0_70, %c0_71, %c6_72, %c0_73, %c0_74], %93 {strides = array<i32>} : memref<1x2x8x14x224xf32, #tpu.memory_space<vmem>>, vector<1x2x1x14x224xf32>,
    %c0_75 = arith.constant 0 : index
    %c7 = arith.constant 7 : index
    %c0_76 = arith.constant 0 : index
    %c0_77 = arith.constant 0 : index
    %94 = vector.load %arg3[%c0_75, %c7, %c0_76, %c0_77] : memref<1x8x32x16xf32, #tpu.memory_space<vmem>>, vector<1x1x32x16xf32>
    %95 = vector.shape_cast %94 : vector<1x1x32x16xf32> to vector<32x16xf32>
    %cst_78 = arith.constant dense<0.000000e+00> : vector<2x16xf32>
    %96 = tpu.matmul %0, %95, %cst_78 {dimension_numbers = #tpu.dot_dimension_numbers<[1], [0], [0], [1], [0, 0, 1, 1], [], []>} : vector<2x32xf32>, vector<32x16xf32>, vector<2x16xf32> -> vector<2x16xf32>
    %cst_79 = arith.constant dense<0.000000e+00> : vector<2x224xf32>
    %97 = tpu.matmul %96, %1, %cst_79 {dimension_numbers = #tpu.dot_dimension_numbers<[1], [0], [0], [1], [0, 0, 1, 1], [], []>} : vector<2x16xf32>, vector<16x224xf32>, vector<2x224xf32> -> vector<2x224xf32>
    %98 = vector.broadcast %9 : vector<2x1xf32> to vector<2x224xf32>
    %99 = arith.addf %97, %98 : vector<2x224xf32>
    %100 = vector.shape_cast %99 : vector<2x224xf32> to vector<2x1x224xf32>
    %101 = vector.shape_cast %100 : vector<2x1x224xf32> to vector<2x1x224xf32>
    %102 = vector.broadcast %101 : vector<2x1x224xf32> to vector<2x14x224xf32>
    %c0_80 = arith.constant 0 : index
    %c0_81 = arith.constant 0 : index
    %c7_82 = arith.constant 7 : index
    %c0_83 = arith.constant 0 : index
    %c0_84 = arith.constant 0 : index
    %103 = vector.load %arg6[%c0_80, %c0_81, %c7_82, %c0_83, %c0_84] : memref<1x2x8x14x224xf32, #tpu.memory_space<vmem>>, vector<1x2x1x14x224xf32>
    %104 = vector.shape_cast %103 : vector<1x2x1x14x224xf32> to vector<2x14x224xf32>
    %105 = vector.shape_cast %102 : vector<2x14x224xf32> to vector<1x2x1x14x224xf32>
    tpu.vector_store %arg6[%c0_80, %c0_81, %c7_82, %c0_83, %c0_84], %105 {strides = array<i32>} : memref<1x2x8x14x224xf32, #tpu.memory_space<vmem>>, vector<1x2x1x14x224xf32>,
    return
  }
  func.func @transform_0(%arg0: i32, %arg1: i32) -> i32 {
    %c0_i32 = arith.constant 0 : i32
    %c0_i32_0 = arith.constant 0 : i32
    return %c0_i32 : i32
  }
  func.func @transform_1(%arg0: i32, %arg1: i32) -> (i32, i32, i32, i32) {
    %c0_i32 = arith.constant 0 : i32
    %c0_i32_0 = arith.constant 0 : i32
    %c0_i32_1 = arith.constant 0 : i32
    return %arg0, %arg1, %c0_i32, %c0_i32_0 : i32, i32, i32, i32
  }
  func.func @transform_2(%arg0: i32, %arg1: i32) -> (i32, i32) {
    %c0_i32 = arith.constant 0 : i32
    %c0_i32_0 = arith.constant 0 : i32
    %c0_i32_1 = arith.constant 0 : i32
    return %c0_i32, %c0_i32_0 : i32, i32
  }
  func.func @transform_3(%arg0: i32, %arg1: i32) -> (i32, i32) {
    %c0_i32 = arith.constant 0 : i32
    %c0_i32_0 = arith.constant 0 : i32
    %c0_i32_1 = arith.constant 0 : i32
    return %c0_i32, %c0_i32_0 : i32, i32
  }
  func.func @transform_4(%arg0: i32, %arg1: i32) -> (i32, i32, i32, i32, i32) {
    %c0_i32 = arith.constant 0 : i32
    %c0_i32_0 = arith.constant 0 : i32
    %c0_i32_1 = arith.constant 0 : i32
    %c0_i32_2 = arith.constant 0 : i32
    return %arg0, %c0_i32, %arg1, %c0_i32_0, %c0_i32_1 : i32, i32, i32, i32, i32
  }
}

</mosaic_0001>

<llo_original>
// kernel: classification_head_forward.1
$region0: #{classification_head_forward.1}
  #allocation0 [shape = 'u32[]', space=smem, size = 0x4, offset = 0x4, fixed_abs, tag = 'smem constant byte address 0x4 - core index']
  #allocation1 [shape = 'u32[144,128]{1,0:T(1,128)}', space=vmem, size = 0x12000, scoped, tag = 'internal scratch']
  %s0 = inlined_call_operand.vmem [shape: f32[2], index: 0, kind: input, shape index: {}]
  %s1 = inlined_call_operand.vmem [shape: f32[2,16,32,16], index: 1, kind: input, shape index: {}]
  %s2 = inlined_call_operand.vmem [shape: f32[2,32], index: 2, kind: input, shape index: {}]
  %s3 = inlined_call_operand.vmem [shape: f32[16,224], index: 3, kind: input, shape index: {}]
  %s4 = inlined_call_operand.vmem [shape: f32[2,2,16,14,224], index: 4, kind: output, shape index: {}]
  %s5 = sld [smem:[#allocation0]]
  $region72: #{classification_head_forward.1} parent=0
    _
  %s7 = ssub.s32 1, %s5
  %s8 = scalar_select 0, %s7, %s5
  $region1: #{classification_head_forward.1} parent=0
    #allocation2 [shape = 'u8[512]{0}', space=smem, size = 0x200, scoped, tag = 'input window, operand 0, single buffered']
    #allocation3 [shape = 's32[2]{0}', space=sflag, size = 0x8, scoped, tag = 'scoped memory for classification_head_forward.1']
    #allocation4 [shape = 'u8[524288]{0}', space=vmem, size = 0x80000, scoped, tag = 'output window, operand 0']
    %9 = vsyncpa [#allocation3], 0
    loop: start=0, step=1, limit=6
    $region2: #{classification_head_forward.1} parent=1 // loop_pre_header
      _
    $region3: #{classification_head_forward.1} parent=1 // loop_header
      %s11 = sphi 0, %s15
      %p12 = scmp.ge.s32.totalorder %s11, 6
      %s18 = sphi 0, %s30
      %s19 = sphi 0, %s26
      %s20 = sphi 0, %s18
      %s21 = sphi 0, %s19
      %s22 = sphi 0, %s20
      %s23 = sphi 0, %s21
      %s31 = sphi 0, %s31
      %s33 = sphi 0, %s31
      %s34 = sphi 0, %s33
      %s48 = sphi 0, %s34
      %s56 = sphi 0, %s58
      %s59 = sphi 0, %s56
      %s60 = sphi 0, %s59
      %s76 = sphi 0, %s60
      %s80 = sphi 0, %s80
      %s82 = sphi 0, %s80
      %s83 = sphi 0, %s82
      %s97 = sphi 0, %s83
      %s101 = sphi 0, %s101
      %s103 = sphi 0, %s101
      %s104 = sphi 0, %s103
      %s118 = sphi 0, %s104
      %s126 = sphi 0, %s128
      %s129 = sphi 0, %s126
      %s130 = sphi 0, %s129
      %s146 = sphi 0, %s130
    $region4: #{classification_head_forward.1} parent=1 // loop_header_branch
      %14 = sbr.rel (%p12) target = $region8
    $region5: #{classification_head_forward.1} parent=1 // loop_body
      %s16 = ssub.s32 %s11, 1
      %s17 = ssub.s32 %s11, 2
      %s24 = sadd.s32 1, %s19
      %p25 = scmp.ge.s32.totalorder %s24, 2
      %s26 = scalar_select %p25, 0, %s24
      %s27 = sadd.s32 1, %s18
      %s28 = scalar_select %p25, %s27, %s18
      %p29 = scmp.ge.s32.totalorder %s28, 2
      %s30 = scalar_select %p29, 0, %s28
      %s32 = sadd.s32 %s31, 1
      %p35 = scmp.eq.s32.totalorder %s11, 3
      %p36 = scmp.ne.s32.totalorder %s31, %s33
      %p37 = scmp.eq.s32.totalorder %s11, 0
      %p38 = por %p36, %p37
      %p39 = scmp.ne.s32.totalorder %s31, %s33
      %p40 = scmp.eq.s32.totalorder %s16, 3
      %p41 = por %p39, %p40
      %p42 = scmp.ne.s32.totalorder %s33, %s34
      %p43 = scmp.eq.s32.totalorder %s16, 0
      %p44 = por %p42, %p43
      %p45 = scmp.ne.s32.totalorder %s33, %s34
      %p46 = scmp.eq.s32.totalorder %s17, 3
      %p47 = por %p45, %p46
      %p49 = scmp.ne.s32.totalorder %s34, %s48
      %p50 = scmp.eq.s32.totalorder %s17, 0
      %p51 = por %p49, %p50
      %s52 = ssub.s32 %s18, %s30
      %s53 = ssub.s32 %s19, %s26
      %s54 = sor.u32 %s52, %s53
      %p55 = scmp.eq.s32.totalorder %s54, 0
      %s57 = sadd.s32 %s56, 1
      %s58 = scalar_select %p55, %s56, %s57
      %p61 = pneg %p55
      %p62 = scmp.eq.s32.totalorder %s11, 3
      %p63 = por %p61, %p62
      %p64 = scmp.ne.s32.totalorder %s56, %s59
      %p65 = scmp.eq.s32.totalorder %s11, 0
      %p66 = por %p64, %p65
      %p67 = scmp.ne.s32.totalorder %s56, %s59
      %p68 = scmp.eq.s32.totalorder %s16, 3
      %p69 = por %p67, %p68
      %p70 = scmp.ne.s32.totalorder %s59, %s60
      %p71 = scmp.eq.s32.totalorder %s16, 0
      %p72 = por %p70, %p71
      %p73 = scmp.ne.s32.totalorder %s59, %s60
      %p74 = scmp.eq.s32.totalorder %s17, 3
      %p75 = por %p73, %p74
      %p77 = scmp.ne.s32.totalorder %s60, %s76
      %p78 = scmp.eq.s32.totalorder %s17, 0
      %p79 = por %p77, %p78
      %s81 = sadd.s32 %s80, 1
      %p84 = scmp.eq.s32.totalorder %s11, 3
      %p85 = scmp.ne.s32.totalorder %s80, %s82
      %p86 = scmp.eq.s32.totalorder %s11, 0
      %p87 = por %p85, %p86
      %p88 = scmp.ne.s32.totalorder %s80, %s82
      %p89 = scmp.eq.s32.totalorder %s16, 3
      %p90 = por %p88, %p89
      %p91 = scmp.ne.s32.totalorder %s82, %s83
      %p92 = scmp.eq.s32.totalorder %s16, 0
      %p93 = por %p91, %p92
      %p94 = scmp.ne.s32.totalorder %s82, %s83
      %p95 = scmp.eq.s32.totalorder %s17, 3
      %p96 = por %p94, %p95
      %p98 = scmp.ne.s32.totalorder %s83, %s97
      %p99 = scmp.eq.s32.totalorder %s17, 0
      %p100 = por %p98, %p99
      %s102 = sadd.s32 %s101, 1
      %p105 = scmp.eq.s32.totalorder %s11, 3
      %p106 = scmp.ne.s32.totalorder %s101, %s103
      %p107 = scmp.eq.s32.totalorder %s11, 0
      %p108 = por %p106, %p107
      %p109 = scmp.ne.s32.totalorder %s101, %s103
      %p110 = scmp.eq.s32.totalorder %s16, 3
      %p111 = por %p109, %p110
      %p112 = scmp.ne.s32.totalorder %s103, %s104
      %p113 = scmp.eq.s32.totalorder %s16, 0
      %p114 = por %p112, %p113
      %p115 = scmp.ne.s32.totalorder %s103, %s104
      %p116 = scmp.eq.s32.totalorder %s17, 3
      %p117 = por %p115, %p116
      %p119 = scmp.ne.s32.totalorder %s104, %s118
      %p120 = scmp.eq.s32.totalorder %s17, 0
      %p121 = por %p119, %p120
      %s122 = ssub.s32 %s18, %s30
      %s123 = ssub.s32 %s19, %s26
      %s124 = sor.u32 %s122, %s123
      %p125 = scmp.eq.s32.totalorder %s124, 0
      %s127 = sadd.s32 %s126, 1
      %s128 = scalar_select %p125, %s126, %s127
      %p131 = pneg %p125
      %p132 = scmp.eq.s32.totalorder %s11, 3
      %p133 = por %p131, %p132
      %p134 = scmp.ne.s32.totalorder %s126, %s129
      %p135 = scmp.eq.s32.totalorder %s11, 0
      %p136 = por %p134, %p135
      %p137 = scmp.ne.s32.totalorder %s126, %s129
      %p138 = scmp.eq.s32.totalorder %s16, 3
      %p139 = por %p137, %p138
      %p140 = scmp.ne.s32.totalorder %s129, %s130
      %p141 = scmp.eq.s32.totalorder %s16, 0
      %p142 = por %p140, %p141
      %p143 = scmp.ne.s32.totalorder %s129, %s130
      %p144 = scmp.eq.s32.totalorder %s17, 3
      %p145 = por %p143, %p144
      %p147 = scmp.ne.s32.totalorder %s130, %s146
      %p148 = scmp.eq.s32.totalorder %s17, 0
      %p149 = por %p147, %p148
      %p150 = scmp.le.s32.totalorder 1, %s11
      %p151 = scmp.lt.s32.totalorder %s11, 5
      %p152 = pnand %p150, %p151
      %p153 = pneg %p152
      // Predicated region
      $region9: #{classification_head_forward.1} parent=5 // pred_check
        _
      $region10: #{classification_head_forward.1} parent=5 // pred_check_branch
        %155 = sbr.rel (%p152) target = $region12
      $region11: #{classification_head_forward.1} parent=5 // pred_region
        %s156 = ssub.s32 %s11, 1
        // Predicated region
        $region13: #{classification_head_forward.1} parent=11 // pred_check
          %p157 = pneg %p44
        $region14: #{classification_head_forward.1} parent=11 // pred_check_branch
          %159 = sbr.rel (%p157) target = $region16
        $region15: #{classification_head_forward.1} parent=11 // pred_region
          %s161 = ssub.s32 16, 16
          %162 = vsyncadd [#allocation3], %s161
          %s164 = sshll.u32 %s0, 4
          %s165 = int_to_ptr.vmem [resolvable:$true] %s164
          %167 = dma.vmem_to_smem %s165, 16, [#allocation2], [#allocation3]
        $region16: #{classification_head_forward.1} parent=11 // pred_fallthru
          _
        // Predicated region
        $region17: #{classification_head_forward.1} parent=11 // pred_check
          %p168 = pneg %p93
        $region18: #{classification_head_forward.1} parent=11 // pred_check_branch
          %170 = sbr.rel (%p168) target = $region20
        $region19: #{classification_head_forward.1} parent=11 // pred_region
          _
        $region20: #{classification_head_forward.1} parent=11 // pred_fallthru
          _
        // Predicated region
        $region21: #{classification_head_forward.1} parent=11 // pred_check
          %p171 = pneg %p114
        $region22: #{classification_head_forward.1} parent=11 // pred_check_branch
          %173 = sbr.rel (%p171) target = $region24
        $region23: #{classification_head_forward.1} parent=11 // pred_region
          _
        $region24: #{classification_head_forward.1} parent=11 // pred_fallthru
          _
      $region12: #{classification_head_forward.1} parent=5 // pred_fallthru
        _
      %p174 = scmp.lt.s32.totalorder %s11, 4
      // Predicated region
      $region25: #{classification_head_forward.1} parent=5 // pred_check
        %p175 = pneg %p174
      $region26: #{classification_head_forward.1} parent=5 // pred_check_branch
        %177 = sbr.rel (%p175) target = $region28
      $region27: #{classification_head_forward.1} parent=5 // pred_region
        // Predicated region
        $region29: #{classification_head_forward.1} parent=27 // pred_check
          %p178 = pneg %p66
        $region30: #{classification_head_forward.1} parent=27 // pred_check_branch
          %180 = sbr.rel (%p178) target = $region32
        $region31: #{classification_head_forward.1} parent=27 // pred_region
          %s181 = smul.u32 8, %s19
          %p182 = scmp.lt.s32.totalorder %s18, 1
          %s183 = scalar_select %p182, %s18, 1
          %p184 = scmp.lt.s32.totalorder %s181, 15
          %s185 = scalar_select %p184, %s181, 15
          %s186 = smul.addr %s185, 4
          %s187 = smul.addr %s183, 64
          %s188 = sadd.s32 %s186, %s187
          %s189 = smul.addr %s188, 8
          %s190 = scalar_lea.vmem %s1, %s189
          %s191 = smul.u32 8, %s19
        $region32: #{classification_head_forward.1} parent=27 // pred_fallthru
          _
      $region28: #{classification_head_forward.1} parent=5 // pred_fallthru
        _
      %p192 = scmp.le.s32.totalorder 1, %s11
      %p193 = scmp.lt.s32.totalorder %s11, 5
      %p194 = pnand %p192, %p193
      %p195 = pneg %p194
      // Predicated region
      $region33: #{classification_head_forward.1} parent=5 // pred_check
        _
      $region34: #{classification_head_forward.1} parent=5 // pred_check_branch
        %197 = sbr.rel (%p194) target = $region36
      $region35: #{classification_head_forward.1} parent=5 // pred_region
        %s198 = ssub.s32 %s11, 1
        // Predicated region
        $region37: #{classification_head_forward.1} parent=35 // pred_check
          %p199 = pneg %p44
        $region38: #{classification_head_forward.1} parent=35 // pred_check_branch
          %201 = sbr.rel (%p199) target = $region40
        $region39: #{classification_head_forward.1} parent=35 // pred_region
          %202 = dma.done [#allocation3], 16
        $region40: #{classification_head_forward.1} parent=35 // pred_fallthru
          _
        %203 = sfence
        %p204 = pneg %p44
        %p205 = pneg %p41
        %s206 = smul.u32 8, %s21
        %p207 = scmp.lt.s32.totalorder %s20, 1
        %s208 = scalar_select %p207, %s20, 1
        %p209 = scmp.lt.s32.totalorder %s206, 15
        %s210 = scalar_select %p209, %s206, 15
        %s211 = smul.addr %s210, 4
        %s212 = smul.addr %s208, 64
        %s213 = sadd.s32 %s211, %s212
        %s214 = smul.addr %s213, 8
        %s215 = scalar_lea.vmem %s1, %s214
        %p216 = pneg %p72
        %p217 = pneg %p69
        %p218 = pneg %p93
        %p219 = pneg %p90
        %p220 = pneg %p114
        %p221 = pneg %p111
        %p222 = pneg %p142
        %p223 = pneg %p139
        %s224 = sand.u32 %s129, 1
        %s225 = sand.u32 %s129, 1
        %s226 = smul.addr %s225, 512
        %s227 = scalar_lea.vmem [#allocation4], %s226
        %s228 = smul.u32 8, %s21
        %p229 = scmp.lt.s32.totalorder %s20, 1
        %s230 = scalar_select %p229, %s20, 1
        %p231 = scmp.lt.s32.totalorder %s228, 15
        %s232 = scalar_select %p231, %s228, 15
        %s233 = smul.addr %s232, 4
        %s234 = smul.addr %s230, 64
        %s235 = sadd.s32 %s233, %s234
        %s236 = smul.addr %s235, 8
        %s237 = scalar_lea.vmem %s1, %s236
        %s238 = smul.u32 8, %s21
        %s239 = smul.u32 8, %s21
        %v240 = vld [vmem:[%s2] sm:$0x3]
        %v241 = vld [vmem:[%s3] sm:$0xff]
        %v242 = vld [vmem:[%s3 + $0x8] sm:$0xff]
        %v243 = vld [vmem:[%s3 + $0x10] sm:$0xff]
        %v244 = vld [vmem:[%s3 + $0x18] sm:$0xff]
        %v245 = vlaneseq
        %v246 = vshrl.u32 %v245, 7
        %vm247 = vcmp.eq.s32.totalorder %v246, 0
        %s248 = sld [smem:[#allocation2]]
        %s249 = sld [smem:[#allocation2 + $0x1]]
        %v250 = vstv %s248
        %v251 = vstv %s249
        %v252 = vsel %vm247, %v250, %v251
        %v253 = vld [vmem:[%s237] sm:$0xff]
        %v254 = vld [vmem:[%s237 + $0x8] sm:$0xff]
        %v255 = vld [vmem:[%s237 + $0x10] sm:$0xff]
        %v256 = vld [vmem:[%s237 + $0x18] sm:$0xff]
        %vm257 = vcmask 261120
        %v259 = vsel %vm257, %v240, 0
        %261 = vmatprep.subr.mxu0 0.0
        %262 = vmatpush1.msra.mxu0 0.0
        %263 = vmatprep.subr.mxu0 0.0
        %264 = vmatpush1.msra.mxu0 0.0
        %265 = vmatprep.subr.mxu0 0.0
        %266 = vmatpush1.msra.mxu0 0.0
        %267 = vmatprep.subr.mxu0 0.0
        %268 = vmatpush1.msra.mxu0 0.0
        %269 = vmatprep.subr.mxu0 0.0
        %270 = vmatpush1.msra.mxu0 0.0
        %271 = vmatprep.subr.mxu0 0.0
        %272 = vmatpush1.msra.mxu0 0.0
        %273 = vmatprep.subr.mxu0 0.0
        %274 = vmatpush1.msra.mxu0 0.0
        %275 = vmatprep.subr.mxu0 0.0
        %276 = vmatpush1.msra.mxu0 0.0
        %277 = vmatprep.subr.mxu0 0.0
        %278 = vmatpush1.msra.mxu0 0.0
        %279 = vmatprep.subr.mxu0 0.0
        %280 = vmatpush1.msra.mxu0 0.0
        %281 = vmatprep.subr.mxu0 0.0
        %282 = vmatpush1.msra.mxu0 0.0
        %283 = vmatprep.subr.mxu0 0.0
        %284 = vmatpush1.msra.mxu0 0.0
        %285 = vmatprep.subr.mxu0 0.0
        %286 = vmatpush1.msra.mxu0 %v256
        %287 = vmatprep.subr.mxu0 0.0
        %288 = vmatpush1.msra.mxu0 %v255
        %289 = vmatprep.subr.mxu0 0.0
        %290 = vmatpush1.msra.mxu0 %v254
        %291 = vmatprep.subr.mxu0 0.0
        %292 = vmatpush1.msra.mxu0 %v253
        %293 = vmatprep.subr.mxu0 0.0
        %294 = vmatpush2.msra.mxu0 0.0
        %295 = vmatprep.subr.mxu0 0.0
        %296 = vmatpush2.msra.mxu0 0.0
        %297 = vmatprep.subr.mxu0 0.0
        %298 = vmatpush2.msra.mxu0 0.0
        %299 = vmatprep.subr.mxu0 0.0
        %300 = vmatpush2.msra.mxu0 0.0
        %301 = vmatprep.subr.mxu0 0.0
        %302 = vmatpush2.msra.mxu0 0.0
        %303 = vmatprep.subr.mxu0 0.0
        %304 = vmatpush2.msra.mxu0 0.0
        %305 = vmatprep.subr.mxu0 0.0
        %306 = vmatpush2.msra.mxu0 0.0
        %307 = vmatprep.subr.mxu0 0.0
        %308 = vmatpush2.msra.mxu0 0.0
        %309 = vmatprep.subr.mxu0 0.0
        %310 = vmatpush2.msra.mxu0 0.0
        %311 = vmatprep.subr.mxu0 0.0
        %312 = vmatpush2.msra.mxu0 0.0
        %313 = vmatprep.subr.mxu0 0.0
        %314 = vmatpush2.msra.mxu0 0.0
        %315 = vmatprep.subr.mxu0 0.0
        %316 = vmatpush2.msra.mxu0 0.0
        %317 = vmatprep.subr.mxu0 0.0
        %318 = vmatpush2.msra.mxu0 0.0
        %319 = vmatprep.subr.mxu0 0.0
        %320 = vmatpush2.msra.mxu0 0.0
        %321 = vmatprep.subr.mxu0 0.0
        %322 = vmatpush2.msra.mxu0 0.0
        %323 = vmatprep.subr.mxu0 0.0
        %324 = vmatpush2.msra.mxu0 0.0
        %325 = vmatprep.mubr.f32.mxu0 0.0
        %326 = vmatmul.mubr.f32.gmra.mxu0 %v259
        %v327 = vpop.f32.mrf.mxu0
        %v328 = vadd.f32 0.0, %v327
        %v329 = vpop.f32.mrf.mxu0
        %330 = vdwg.mxu0
        %vm331 = vcmask 130048
        %v333 = vsel %vm331, %v328, 0
        %335 = vmatprep.subr.mxu0 0.0
        %336 = vmatpush1.msra.mxu0 0.0
        %337 = vmatprep.subr.mxu0 0.0
        %338 = vmatpush1.msra.mxu0 0.0
        %339 = vmatprep.subr.mxu0 0.0
        %340 = vmatpush1.msra.mxu0 0.0
        %341 = vmatprep.subr.mxu0 0.0
        %342 = vmatpush1.msra.mxu0 0.0
        %343 = vmatprep.subr.mxu0 0.0
        %344 = vmatpush1.msra.mxu0 0.0
        %345 = vmatprep.subr.mxu0 0.0
        %346 = vmatpush1.msra.mxu0 0.0
        %347 = vmatprep.subr.mxu0 0.0
        %348 = vmatpush1.msra.mxu0 0.0
        %349 = vmatprep.subr.mxu0 0.0
        %350 = vmatpush1.msra.mxu0 0.0
        %351 = vmatprep.subr.mxu0 0.0
        %352 = vmatpush1.msra.mxu0 0.0
        %353 = vmatprep.subr.mxu0 0.0
        %354 = vmatpush1.msra.mxu0 0.0
        %355 = vmatprep.subr.mxu0 0.0
        %356 = vmatpush1.msra.mxu0 0.0
        %357 = vmatprep.subr.mxu0 0.0
        %358 = vmatpush1.msra.mxu0 0.0
        %359 = vmatprep.subr.mxu0 0.0
        %360 = vmatpush1.msra.mxu0 0.0
        %361 = vmatprep.subr.mxu0 0.0
        %362 = vmatpush1.msra.mxu0 0.0
        %363 = vmatprep.subr.mxu0 %v244
        %364 = vmatpush1.msra.mxu0 %v243
        %365 = vmatprep.subr.mxu0 %v242
        %366 = vmatpush1.msra.mxu0 %v241
        %367 = vmatprep.subr.mxu0 0.0
        %368 = vmatpush2.msra.mxu0 0.0
        %369 = vmatprep.subr.mxu0 0.0
        %370 = vmatpush2.msra.mxu0 0.0
        %371 = vmatprep.subr.mxu0 0.0
        %372 = vmatpush2.msra.mxu0 0.0
        %373 = vmatprep.subr.mxu0 0.0
        %374 = vmatpush2.msra.mxu0 0.0
        %375 = vmatprep.subr.mxu0 0.0
        %376 = vmatpush2.msra.mxu0 0.0
        %377 = vmatprep.subr.mxu0 0.0
        %378 = vmatpush2.msra.mxu0 0.0
        %379 = vmatprep.subr.mxu0 0.0
        %380 = vmatpush2.msra.mxu0 0.0
        %381 = vmatprep.subr.mxu0 0.0
        %382 = vmatpush2.msra.mxu0 0.0
        %383 = vmatprep.subr.mxu0 0.0
        %384 = vmatpush2.msra.mxu0 0.0
        %385 = vmatprep.subr.mxu0 0.0
        %386 = vmatpush2.msra.mxu0 0.0
        %387 = vmatprep.subr.mxu0 0.0
        %388 = vmatpush2.msra.mxu0 0.0
        %389 = vmatprep.subr.mxu0 0.0
        %390 = vmatpush2.msra.mxu0 0.0
        %391 = vmatprep.subr.mxu0 0.0
        %392 = vmatpush2.msra.mxu0 0.0
        %393 = vmatprep.subr.mxu0 0.0
        %394 = vmatpush2.msra.mxu0 0.0
        %395 = vmatprep.subr.mxu0 0.0
        %396 = vmatpush2.msra.mxu0 0.0
        %397 = vmatprep.subr.mxu0 0.0
        %398 = vmatpush2.msra.mxu0 0.0
        %399 = vmatprep.mubr.f32.mxu0 0.0
        %400 = vmatmul.mubr.f32.gmra.mxu0 %v333
        %v401 = vpop.f32.mrf.mxu0
        %v402 = vadd.f32 %v252, %v401
        %v403 = vpop.f32.mrf.mxu0
        %v404 = vadd.f32 %v252, %v403
        %405 = vdwg.mxu0
        %v408 = vcombine.low %v402, %v404
        %v410 = vunpack.c.l.s4 1966171168
        %v411 = vunpack.c.0.s8 %v410
        %v412 = vlaneseq
        %v413 = vshrl.u32 %v412, 7
        %v414 = vsub.s32 %v411, %v413
        %v415 = vrot.slane %v408, %v414
        %v416 = vcombine.high %v415, %v415
        %v418 = vunpack.c.l.s4 1966171168
        %v419 = vunpack.c.0.s8 %v418
        %v420 = vlaneseq
        %v421 = vshrl.u32 %v420, 7
        %v422 = vsub.s32 %v419, %v421
        %v423 = vrot.slane %v415, %v422
        %v425 = vunpack.c.l.s4 1966171168
        %v426 = vunpack.c.0.s8 %v425
        %v427 = vlaneseq
        %v428 = vshrl.u32 %v427, 7
        %v429 = vsub.s32 %v426, %v428
        %v430 = vrot.slane %v416, %v429
        %v431 = vlaneseq
        %v432 = vshrl.u32 %v431, 7
        %v433 = vsub.s32 0, %v432
        %v434 = vrot.slane %v423, %v433
        %v435 = vlaneseq
        %v436 = vshrl.u32 %v435, 7
        %v437 = vsub.s32 1, %v436
        %v438 = vrot.slane %v423, %v437
        %v439 = vlaneseq
        %v440 = vshrl.u32 %v439, 7
        %v441 = vsub.s32 0, %v440
        %v442 = vrot.slane %v430, %v441
        %v443 = vlaneseq
        %v444 = vshrl.u32 %v443, 7
        %v445 = vsub.s32 1, %v444
        %v446 = vrot.slane %v430, %v445
        %451 = vst [vmem:[%s227] sm:$0xff] %v434
        %vm452 = vcmask 785408
        %453 = vst.msk [vmem:[%s227 + $0x8] sm:$0xff] %vm452, %v438
        %454 = vst [vmem:[%s227 + $0x10] sm:$0x3f] %v434
        %vm455 = vcmask 783360
        %456 = vst.msk [vmem:[%s227 + $0x18] sm:$0x3f] %vm455, %v438
        %457 = vst [vmem:[%s227 + $0x100] sm:$0xff] %v442
        %458 = vst.msk [vmem:[%s227 + $0x108] sm:$0xff] %vm452, %v446
        %459 = vst [vmem:[%s227 + $0x110] sm:$0x3f] %v442
        %460 = vst.msk [vmem:[%s227 + $0x118] sm:$0x3f] %vm455, %v446
        %s461 = scalar_lea.vmem %s237, 32
        %v462 = vld [vmem:[%s461] sm:$0xff]
        %v463 = vld [vmem:[%s461 + $0x8] sm:$0xff]
        %v464 = vld [vmem:[%s461 + $0x10] sm:$0xff]
        %v465 = vld [vmem:[%s461 + $0x18] sm:$0xff]
        %466 = vmatprep.subr.mxu0 0.0
        %467 = vmatpush1.msra.mxu0 0.0
        %468 = vmatprep.subr.mxu0 0.0
        %469 = vmatpush1.msra.mxu0 0.0
        %470 = vmatprep.subr.mxu0 0.0
        %471 = vmatpush1.msra.mxu0 0.0
        %472 = vmatprep.subr.mxu0 0.0
        %473 = vmatpush1.msra.mxu0 0.0
        %474 = vmatprep.subr.mxu0 0.0
        %475 = vmatpush1.msra.mxu0 0.0
        %476 = vmatprep.subr.mxu0 0.0
        %477 = vmatpush1.msra.mxu0 0.0
        %478 = vmatprep.subr.mxu0 0.0
        %479 = vmatpush1.msra.mxu0 0.0
        %480 = vmatprep.subr.mxu0 0.0
        %481 = vmatpush1.msra.mxu0 0.0
        %482 = vmatprep.subr.mxu0 0.0
        %483 = vmatpush1.msra.mxu0 0.0
        %484 = vmatprep.subr.mxu0 0.0
        %485 = vmatpush1.msra.mxu0 0.0
        %486 = vmatprep.subr.mxu0 0.0
        %487 = vmatpush1.msra.mxu0 0.0
        %488 = vmatprep.subr.mxu0 0.0
        %489 = vmatpush1.msra.mxu0 0.0
        %490 = vmatprep.subr.mxu0 0.0
        %491 = vmatpush1.msra.mxu0 %v465
        %492 = vmatprep.subr.mxu0 0.0
        %493 = vmatpush1.msra.mxu0 %v464
        %494 = vmatprep.subr.mxu0 0.0
        %495 = vmatpush1.msra.mxu0 %v463
        %496 = vmatprep.subr.mxu0 0.0
        %497 = vmatpush1.msra.mxu0 %v462
        %498 = vmatprep.subr.mxu0 0.0
        %499 = vmatpush2.msra.mxu0 0.0
        %500 = vmatprep.subr.mxu0 0.0
        %501 = vmatpush2.msra.mxu0 0.0
        %502 = vmatprep.subr.mxu0 0.0
        %503 = vmatpush2.msra.mxu0 0.0
        %504 = vmatprep.subr.mxu0 0.0
        %505 = vmatpush2.msra.mxu0 0.0
        %506 = vmatprep.subr.mxu0 0.0
        %507 = vmatpush2.msra.mxu0 0.0
        %508 = vmatprep.subr.mxu0 0.0
        %509 = vmatpush2.msra.mxu0 0.0
        %510 = vmatprep.subr.mxu0 0.0
        %511 = vmatpush2.msra.mxu0 0.0
        %512 = vmatprep.subr.mxu0 0.0
        %513 = vmatpush2.msra.mxu0 0.0
        %514 = vmatprep.subr.mxu0 0.0
        %515 = vmatpush2.msra.mxu0 0.0
        %516 = vmatprep.subr.mxu0 0.0
        %517 = vmatpush2.msra.mxu0 0.0
        %518 = vmatprep.subr.mxu0 0.0
        %519 = vmatpush2.msra.mxu0 0.0
        %520 = vmatprep.subr.mxu0 0.0
        %521 = vmatpush2.msra.mxu0 0.0
        %522 = vmatprep.subr.mxu0 0.0
        %523 = vmatpush2.msra.mxu0 0.0
        %524 = vmatprep.subr.mxu0 0.0
        %525 = vmatpush2.msra.mxu0 0.0
        %526 = vmatprep.subr.mxu0 0.0
        %527 = vmatpush2.msra.mxu0 0.0
        %528 = vmatprep.subr.mxu0 0.0
        %529 = vmatpush2.msra.mxu0 0.0
        %530 = vmatprep.mubr.f32.mxu0 0.0
        %531 = vmatmul.mubr.f32.gmra.mxu0 %v259
        %v532 = vpop.f32.mrf.mxu0
        %v533 = vadd.f32 0.0, %v532
        %v534 = vpop.f32.mrf.mxu0
        %535 = vdwg.mxu0
        %v537 = vsel %vm331, %v533, 0
        %539 = vmatprep.subr.mxu0 0.0
        %540 = vmatpush1.msra.mxu0 0.0
        %541 = vmatprep.subr.mxu0 0.0
        %542 = vmatpush1.msra.mxu0 0.0
        %543 = vmatprep.subr.mxu0 0.0
        %544 = vmatpush1.msra.mxu0 0.0
        %545 = vmatprep.subr.mxu0 0.0
        %546 = vmatpush1.msra.mxu0 0.0
        %547 = vmatprep.subr.mxu0 0.0
        %548 = vmatpush1.msra.mxu0 0.0
        %549 = vmatprep.subr.mxu0 0.0
        %550 = vmatpush1.msra.mxu0 0.0
        %551 = vmatprep.subr.mxu0 0.0
        %552 = vmatpush1.msra.mxu0 0.0
        %553 = vmatprep.subr.mxu0 0.0
        %554 = vmatpush1.msra.mxu0 0.0
        %555 = vmatprep.subr.mxu0 0.0
        %556 = vmatpush1.msra.mxu0 0.0
        %557 = vmatprep.subr.mxu0 0.0
        %558 = vmatpush1.msra.mxu0 0.0
        %559 = vmatprep.subr.mxu0 0.0
        %560 = vmatpush1.msra.mxu0 0.0
        %561 = vmatprep.subr.mxu0 0.0
        %562 = vmatpush1.msra.mxu0 0.0
        %563 = vmatprep.subr.mxu0 0.0
        %564 = vmatpush1.msra.mxu0 0.0
        %565 = vmatprep.subr.mxu0 0.0
        %566 = vmatpush1.msra.mxu0 0.0
        %567 = vmatprep.subr.mxu0 %v244
        %568 = vmatpush1.msra.mxu0 %v243
        %569 = vmatprep.subr.mxu0 %v242
        %570 = vmatpush1.msra.mxu0 %v241
        %571 = vmatprep.subr.mxu0 0.0
        %572 = vmatpush2.msra.mxu0 0.0
        %573 = vmatprep.subr.mxu0 0.0
        %574 = vmatpush2.msra.mxu0 0.0
        %575 = vmatprep.subr.mxu0 0.0
        %576 = vmatpush2.msra.mxu0 0.0
        %577 = vmatprep.subr.mxu0 0.0
        %578 = vmatpush2.msra.mxu0 0.0
        %579 = vmatprep.subr.mxu0 0.0
        %580 = vmatpush2.msra.mxu0 0.0
        %581 = vmatprep.subr.mxu0 0.0
        %582 = vmatpush2.msra.mxu0 0.0
        %583 = vmatprep.subr.mxu0 0.0
        %584 = vmatpush2.msra.mxu0 0.0
        %585 = vmatprep.subr.mxu0 0.0
        %586 = vmatpush2.msra.mxu0 0.0
        %587 = vmatprep.subr.mxu0 0.0
        %588 = vmatpush2.msra.mxu0 0.0
        %589 = vmatprep.subr.mxu0 0.0
        %590 = vmatpush2.msra.mxu0 0.0
        %591 = vmatprep.subr.mxu0 0.0
        %592 = vmatpush2.msra.mxu0 0.0
        %593 = vmatprep.subr.mxu0 0.0
        %594 = vmatpush2.msra.mxu0 0.0
        %595 = vmatprep.subr.mxu0 0.0
        %596 = vmatpush2.msra.mxu0 0.0
        %597 = vmatprep.subr.mxu0 0.0
        %598 = vmatpush2.msra.mxu0 0.0
        %599 = vmatprep.subr.mxu0 0.0
        %600 = vmatpush2.msra.mxu0 0.0
        %601 = vmatprep.subr.mxu0 0.0
        %602 = vmatpush2.msra.mxu0 0.0
        %603 = vmatprep.mubr.f32.mxu0 0.0
        %604 = vmatmul.mubr.f32.gmra.mxu0 %v537
        %v605 = vpop.f32.mrf.mxu0
        %v606 = vadd.f32 %v252, %v605
        %v607 = vpop.f32.mrf.mxu0
        %v608 = vadd.f32 %v252, %v607
        %609 = vdwg.mxu0
        %v612 = vcombine.low %v606, %v608
        %v614 = vunpack.c.l.s4 1966171168
        %v615 = vunpack.c.0.s8 %v614
        %v616 = vlaneseq
        %v617 = vshrl.u32 %v616, 7
        %v618 = vsub.s32 %v615, %v617
        %v619 = vrot.slane %v612, %v618
        %v620 = vcombine.high %v619, %v619
        %v622 = vunpack.c.l.s4 1966171168
        %v623 = vunpack.c.0.s8 %v622
        %v624 = vlaneseq
        %v625 = vshrl.u32 %v624, 7
        %v626 = vsub.s32 %v623, %v625
        %v627 = vrot.slane %v619, %v626
        %v629 = vunpack.c.l.s4 1966171168
        %v630 = vunpack.c.0.s8 %v629
        %v631 = vlaneseq
        %v632 = vshrl.u32 %v631, 7
        %v633 = vsub.s32 %v630, %v632
        %v634 = vrot.slane %v620, %v633
        %v635 = vlaneseq
        %v636 = vshrl.u32 %v635, 7
        %v637 = vsub.s32 0, %v636
        %v638 = vrot.slane %v627, %v637
        %v639 = vlaneseq
        %v640 = vshrl.u32 %v639, 7
        %v641 = vsub.s32 1, %v640
        %v642 = vrot.slane %v627, %v641
        %v643 = vlaneseq
        %v644 = vshrl.u32 %v643, 7
        %v645 = vsub.s32 0, %v644
        %v646 = vrot.slane %v634, %v645
        %v647 = vlaneseq
        %v648 = vshrl.u32 %v647, 7
        %v649 = vsub.s32 1, %v648
        %v650 = vrot.slane %v634, %v649
        %s655 = scalar_lea.vmem %s227, 32 [#allocation4]
        %656 = vst [vmem:[%s655] sm:$0xff] %v638
        %657 = vst.msk [vmem:[%s655 + $0x8] sm:$0xff] %vm452, %v642
        %658 = vst [vmem:[%s655 + $0x10] sm:$0x3f] %v638
        %659 = vst.msk [vmem:[%s655 + $0x18] sm:$0x3f] %vm455, %v642
        %660 = vst [vmem:[%s655 + $0x100] sm:$0xff] %v646
        %661 = vst.msk [vmem:[%s655 + $0x108] sm:$0xff] %vm452, %v650
        %662 = vst [vmem:[%s655 + $0x110] sm:$0x3f] %v646
        %663 = vst.msk [vmem:[%s655 + $0x118] sm:$0x3f] %vm455, %v650
        %s664 = scalar_lea.vmem %s237, 64
        %v665 = vld [vmem:[%s664] sm:$0xff]
        %v666 = vld [vmem:[%s664 + $0x8] sm:$0xff]
        %v667 = vld [vmem:[%s664 + $0x10] sm:$0xff]
        %v668 = vld [vmem:[%s664 + $0x18] sm:$0xff]
        %669 = vmatprep.subr.mxu0 0.0
        %670 = vmatpush1.msra.mxu0 0.0
        %671 = vmatprep.subr.mxu0 0.0
        %672 = vmatpush1.msra.mxu0 0.0
        %673 = vmatprep.subr.mxu0 0.0
        %674 = vmatpush1.msra.mxu0 0.0
        %675 = vmatprep.subr.mxu0 0.0
        %676 = vmatpush1.msra.mxu0 0.0
        %677 = vmatprep.subr.mxu0 0.0
        %678 = vmatpush1.msra.mxu0 0.0
        %679 = vmatprep.subr.mxu0 0.0
        %680 = vmatpush1.msra.mxu0 0.0
        %681 = vmatprep.subr.mxu0 0.0
        %682 = vmatpush1.msra.mxu0 0.0
        %683 = vmatprep.subr.mxu0 0.0
        %684 = vmatpush1.msra.mxu0 0.0
        %685 = vmatprep.subr.mxu0 0.0
        %686 = vmatpush1.msra.mxu0 0.0
        %687 = vmatprep.subr.mxu0 0.0
        %688 = vmatpush1.msra.mxu0 0.0
        %689 = vmatprep.subr.mxu0 0.0
        %690 = vmatpush1.msra.mxu0 0.0
        %691 = vmatprep.subr.mxu0 0.0
        %692 = vmatpush1.msra.mxu0 0.0
        %693 = vmatprep.subr.mxu0 0.0
        %694 = vmatpush1.msra.mxu0 %v668
        %695 = vmatprep.subr.mxu0 0.0
        %696 = vmatpush1.msra.mxu0 %v667
        %697 = vmatprep.subr.mxu0 0.0
        %698 = vmatpush1.msra.mxu0 %v666
        %699 = vmatprep.subr.mxu0 0.0
        %700 = vmatpush1.msra.mxu0 %v665
        %701 = vmatprep.subr.mxu0 0.0
        %702 = vmatpush2.msra.mxu0 0.0
        %703 = vmatprep.subr.mxu0 0.0
        %704 = vmatpush2.msra.mxu0 0.0
        %705 = vmatprep.subr.mxu0 0.0
        %706 = vmatpush2.msra.mxu0 0.0
        %707 = vmatprep.subr.mxu0 0.0
        %708 = vmatpush2.msra.mxu0 0.0
        %709 = vmatprep.subr.mxu0 0.0
        %710 = vmatpush2.msra.mxu0 0.0
        %711 = vmatprep.subr.mxu0 0.0
        %712 = vmatpush2.msra.mxu0 0.0
        %713 = vmatprep.subr.mxu0 0.0
        %714 = vmatpush2.msra.mxu0 0.0
        %715 = vmatprep.subr.mxu0 0.0
        %716 = vmatpush2.msra.mxu0 0.0
        %717 = vmatprep.subr.mxu0 0.0
        %718 = vmatpush2.msra.mxu0 0.0
        %719 = vmatprep.subr.mxu0 0.0
        %720 = vmatpush2.msra.mxu0 0.0
        %721 = vmatprep.subr.mxu0 0.0
        %722 = vmatpush2.msra.mxu0 0.0
        %723 = vmatprep.subr.mxu0 0.0
        %724 = vmatpush2.msra.mxu0 0.0
        %725 = vmatprep.subr.mxu0 0.0
        %726 = vmatpush2.msra.mxu0 0.0
        %727 = vmatprep.subr.mxu0 0.0
        %728 = vmatpush2.msra.mxu0 0.0
        %729 = vmatprep.subr.mxu0 0.0
        %730 = vmatpush2.msra.mxu0 0.0
        %731 = vmatprep.subr.mxu0 0.0
        %732 = vmatpush2.msra.mxu0 0.0
        %733 = vmatprep.mubr.f32.mxu0 0.0
        %734 = vmatmul.mubr.f32.gmra.mxu0 %v259
        %v735 = vpop.f32.mrf.mxu0
        %v736 = vadd.f32 0.0, %v735
        %v737 = vpop.f32.mrf.mxu0
        %738 = vdwg.mxu0
        %v740 = vsel %vm331, %v736, 0
        %742 = vmatprep.subr.mxu0 0.0
        %743 = vmatpush1.msra.mxu0 0.0
        %744 = vmatprep.subr.mxu0 0.0
        %745 = vmatpush1.msra.mxu0 0.0
        %746 = vmatprep.subr.mxu0 0.0
        %747 = vmatpush1.msra.mxu0 0.0
        %748 = vmatprep.subr.mxu0 0.0
        %749 = vmatpush1.msra.mxu0 0.0
        %750 = vmatprep.subr.mxu0 0.0
        %751 = vmatpush1.msra.mxu0 0.0
        %752 = vmatprep.subr.mxu0 0.0
        %753 = vmatpush1.msra.mxu0 0.0
        %754 = vmatprep.subr.mxu0 0.0
        %755 = vmatpush1.msra.mxu0 0.0
        %756 = vmatprep.subr.mxu0 0.0
        %757 = vmatpush1.msra.mxu0 0.0
        %758 = vmatprep.subr.mxu0 0.0
        %759 = vmatpush1.msra.mxu0 0.0
        %760 = vmatprep.subr.mxu0 0.0
        %761 = vmatpush1.msra.mxu0 0.0
        %762 = vmatprep.subr.mxu0 0.0
        %763 = vmatpush1.msra.mxu0 0.0
        %764 = vmatprep.subr.mxu0 0.0
        %765 = vmatpush1.msra.mxu0 0.0
        %766 = vmatprep.subr.mxu0 0.0
        %767 = vmatpush1.msra.mxu0 0.0
        %768 = vmatprep.subr.mxu0 0.0
        %769 = vmatpush1.msra.mxu0 0.0
        %770 = vmatprep.subr.mxu0 %v244
        %771 = vmatpush1.msra.mxu0 %v243
        %772 = vmatprep.subr.mxu0 %v242
        %773 = vmatpush1.msra.mxu0 %v241
        %774 = vmatprep.subr.mxu0 0.0
        %775 = vmatpush2.msra.mxu0 0.0
        %776 = vmatprep.subr.mxu0 0.0
        %777 = vmatpush2.msra.mxu0 0.0
        %778 = vmatprep.subr.mxu0 0.0
        %779 = vmatpush2.msra.mxu0 0.0
        %780 = vmatprep.subr.mxu0 0.0
        %781 = vmatpush2.msra.mxu0 0.0
        %782 = vmatprep.subr.mxu0 0.0
        %783 = vmatpush2.msra.mxu0 0.0
        %784 = vmatprep.subr.mxu0 0.0
        %785 = vmatpush2.msra.mxu0 0.0
        %786 = vmatprep.subr.mxu0 0.0
        %787 = vmatpush2.msra.mxu0 0.0
        %788 = vmatprep.subr.mxu0 0.0
        %789 = vmatpush2.msra.mxu0 0.0
        %790 = vmatprep.subr.mxu0 0.0
        %791 = vmatpush2.msra.mxu0 0.0
        %792 = vmatprep.subr.mxu0 0.0
        %793 = vmatpush2.msra.mxu0 0.0
        %794 = vmatprep.subr.mxu0 0.0
        %795 = vmatpush2.msra.mxu0 0.0
        %796 = vmatprep.subr.mxu0 0.0
        %797 = vmatpush2.msra.mxu0 0.0
        %798 = vmatprep.subr.mxu0 0.0
        %799 = vmatpush2.msra.mxu0 0.0
        %800 = vmatprep.subr.mxu0 0.0
        %801 = vmatpush2.msra.mxu0 0.0
        %802 = vmatprep.subr.mxu0 0.0
        %803 = vmatpush2.msra.mxu0 0.0
        %804 = vmatprep.subr.mxu0 0.0
        %805 = vmatpush2.msra.mxu0 0.0
        %806 = vmatprep.mubr.f32.mxu0 0.0
        %807 = vmatmul.mubr.f32.gmra.mxu0 %v740
        %v808 = vpop.f32.mrf.mxu0
        %v809 = vadd.f32 %v252, %v808
        %v810 = vpop.f32.mrf.mxu0
        %v811 = vadd.f32 %v252, %v810
        %812 = vdwg.mxu0
        %v815 = vcombine.low %v809, %v811
        %v817 = vunpack.c.l.s4 1966171168
        %v818 = vunpack.c.0.s8 %v817
        %v819 = vlaneseq
        %v820 = vshrl.u32 %v819, 7
        %v821 = vsub.s32 %v818, %v820
        %v822 = vrot.slane %v815, %v821
        %v823 = vcombine.high %v822, %v822
        %v825 = vunpack.c.l.s4 1966171168
        %v826 = vunpack.c.0.s8 %v825
        %v827 = vlaneseq
        %v828 = vshrl.u32 %v827, 7
        %v829 = vsub.s32 %v826, %v828
        %v830 = vrot.slane %v822, %v829
        %v832 = vunpack.c.l.s4 1966171168
        %v833 = vunpack.c.0.s8 %v832
        %v834 = vlaneseq
        %v835 = vshrl.u32 %v834, 7
        %v836 = vsub.s32 %v833, %v835
        %v837 = vrot.slane %v823, %v836
        %v838 = vlaneseq
        %v839 = vshrl.u32 %v838, 7
        %v840 = vsub.s32 0, %v839
        %v841 = vrot.slane %v830, %v840
        %v842 = vlaneseq
        %v843 = vshrl.u32 %v842, 7
        %v844 = vsub.s32 1, %v843
        %v845 = vrot.slane %v830, %v844
        %v846 = vlaneseq
        %v847 = vshrl.u32 %v846, 7
        %v848 = vsub.s32 0, %v847
        %v849 = vrot.slane %v837, %v848
        %v850 = vlaneseq
        %v851 = vshrl.u32 %v850, 7
        %v852 = vsub.s32 1, %v851
        %v853 = vrot.slane %v837, %v852
        %s858 = scalar_lea.vmem %s227, 64 [#allocation4]
        %859 = vst [vmem:[%s858] sm:$0xff] %v841
        %860 = vst.msk [vmem:[%s858 + $0x8] sm:$0xff] %vm452, %v845
        %861 = vst [vmem:[%s858 + $0x10] sm:$0x3f] %v841
        %862 = vst.msk [vmem:[%s858 + $0x18] sm:$0x3f] %vm455, %v845
        %863 = vst [vmem:[%s858 + $0x100] sm:$0xff] %v849
        %864 = vst.msk [vmem:[%s858 + $0x108] sm:$0xff] %vm452, %v853
        %865 = vst [vmem:[%s858 + $0x110] sm:$0x3f] %v849
        %866 = vst.msk [vmem:[%s858 + $0x118] sm:$0x3f] %vm455, %v853
        %s867 = scalar_lea.vmem %s237, 96
        %v868 = vld [vmem:[%s867] sm:$0xff]
        %v869 = vld [vmem:[%s867 + $0x8] sm:$0xff]
        %v870 = vld [vmem:[%s867 + $0x10] sm:$0xff]
        %v871 = vld [vmem:[%s867 + $0x18] sm:$0xff]
        %872 = vmatprep.subr.mxu0 0.0
        %873 = vmatpush1.msra.mxu0 0.0
        %874 = vmatprep.subr.mxu0 0.0
        %875 = vmatpush1.msra.mxu0 0.0
        %876 = vmatprep.subr.mxu0 0.0
        %877 = vmatpush1.msra.mxu0 0.0
        %878 = vmatprep.subr.mxu0 0.0
        %879 = vmatpush1.msra.mxu0 0.0
        %880 = vmatprep.subr.mxu0 0.0
        %881 = vmatpush1.msra.mxu0 0.0
        %882 = vmatprep.subr.mxu0 0.0
        %883 = vmatpush1.msra.mxu0 0.0
        %884 = vmatprep.subr.mxu0 0.0
        %885 = vmatpush1.msra.mxu0 0.0
        %886 = vmatprep.subr.mxu0 0.0
        %887 = vmatpush1.msra.mxu0 0.0
        %888 = vmatprep.subr.mxu0 0.0
        %889 = vmatpush1.msra.mxu0 0.0
        %890 = vmatprep.subr.mxu0 0.0
        %891 = vmatpush1.msra.mxu0 0.0
        %892 = vmatprep.subr.mxu0 0.0
        %893 = vmatpush1.msra.mxu0 0.0
        %894 = vmatprep.subr.mxu0 0.0
        %895 = vmatpush1.msra.mxu0 0.0
        %896 = vmatprep.subr.mxu0 0.0
        %897 = vmatpush1.msra.mxu0 %v871
        %898 = vmatprep.subr.mxu0 0.0
        %899 = vmatpush1.msra.mxu0 %v870
        %900 = vmatprep.subr.mxu0 0.0
        %901 = vmatpush1.msra.mxu0 %v869
        %902 = vmatprep.subr.mxu0 0.0
        %903 = vmatpush1.msra.mxu0 %v868
        %904 = vmatprep.subr.mxu0 0.0
        %905 = vmatpush2.msra.mxu0 0.0
        %906 = vmatprep.subr.mxu0 0.0
        %907 = vmatpush2.msra.mxu0 0.0
        %908 = vmatprep.subr.mxu0 0.0
        %909 = vmatpush2.msra.mxu0 0.0
        %910 = vmatprep.subr.mxu0 0.0
        %911 = vmatpush2.msra.mxu0 0.0
        %912 = vmatprep.subr.mxu0 0.0
        %913 = vmatpush2.msra.mxu0 0.0
        %914 = vmatprep.subr.mxu0 0.0
        %915 = vmatpush2.msra.mxu0 0.0
        %916 = vmatprep.subr.mxu0 0.0
        %917 = vmatpush2.msra.mxu0 0.0
        %918 = vmatprep.subr.mxu0 0.0
        %919 = vmatpush2.msra.mxu0 0.0
        %920 = vmatprep.subr.mxu0 0.0
        %921 = vmatpush2.msra.mxu0 0.0
        %922 = vmatprep.subr.mxu0 0.0
        %923 = vmatpush2.msra.mxu0 0.0
        %924 = vmatprep.subr.mxu0 0.0
        %925 = vmatpush2.msra.mxu0 0.0
        %926 = vmatprep.subr.mxu0 0.0
        %927 = vmatpush2.msra.mxu0 0.0
        %928 = vmatprep.subr.mxu0 0.0
        %929 = vmatpush2.msra.mxu0 0.0
        %930 = vmatprep.subr.mxu0 0.0
        %931 = vmatpush2.msra.mxu0 0.0
        %932 = vmatprep.subr.mxu0 0.0
        %933 = vmatpush2.msra.mxu0 0.0
        %934 = vmatprep.subr.mxu0 0.0
        %935 = vmatpush2.msra.mxu0 0.0
        %936 = vmatprep.mubr.f32.mxu0 0.0
        %937 = vmatmul.mubr.f32.gmra.mxu0 %v259
        %v938 = vpop.f32.mrf.mxu0
        %v939 = vadd.f32 0.0, %v938
        %v940 = vpop.f32.mrf.mxu0
        %941 = vdwg.mxu0
        %v943 = vsel %vm331, %v939, 0
        %945 = vmatprep.subr.mxu0 0.0
        %946 = vmatpush1.msra.mxu0 0.0
        %947 = vmatprep.subr.mxu0 0.0
        %948 = vmatpush1.msra.mxu0 0.0
        %949 = vmatprep.subr.mxu0 0.0
        %950 = vmatpush1.msra.mxu0 0.0
        %951 = vmatprep.subr.mxu0 0.0
        %952 = vmatpush1.msra.mxu0 0.0
        %953 = vmatprep.subr.mxu0 0.0
        %954 = vmatpush1.msra.mxu0 0.0
        %955 = vmatprep.subr.mxu0 0.0
        %956 = vmatpush1.msra.mxu0 0.0
        %957 = vmatprep.subr.mxu0 0.0
        %958 = vmatpush1.msra.mxu0 0.0
        %959 = vmatprep.subr.mxu0 0.0
        %960 = vmatpush1.msra.mxu0 0.0
        %961 = vmatprep.subr.mxu0 0.0
        %962 = vmatpush1.msra.mxu0 0.0
        %963 = vmatprep.subr.mxu0 0.0
        %964 = vmatpush1.msra.mxu0 0.0
        %965 = vmatprep.subr.mxu0 0.0
        %966 = vmatpush1.msra.mxu0 0.0
        %967 = vmatprep.subr.mxu0 0.0
        %968 = vmatpush1.msra.mxu0 0.0
        %969 = vmatprep.subr.mxu0 0.0
        %970 = vmatpush1.msra.mxu0 0.0
        %971 = vmatprep.subr.mxu0 0.0
        %972 = vmatpush1.msra.mxu0 0.0
        %973 = vmatprep.subr.mxu0 %v244
        %974 = vmatpush1.msra.mxu0 %v243
        %975 = vmatprep.subr.mxu0 %v242
        %976 = vmatpush1.msra.mxu0 %v241
        %977 = vmatprep.subr.mxu0 0.0
        %978 = vmatpush2.msra.mxu0 0.0
        %979 = vmatprep.subr.mxu0 0.0
        %980 = vmatpush2.msra.mxu0 0.0
        %981 = vmatprep.subr.mxu0 0.0
        %982 = vmatpush2.msra.mxu0 0.0
        %983 = vmatprep.subr.mxu0 0.0
        %984 = vmatpush2.msra.mxu0 0.0
        %985 = vmatprep.subr.mxu0 0.0
        %986 = vmatpush2.msra.mxu0 0.0
        %987 = vmatprep.subr.mxu0 0.0
        %988 = vmatpush2.msra.mxu0 0.0
        %989 = vmatprep.subr.mxu0 0.0
        %990 = vmatpush2.msra.mxu0 0.0
        %991 = vmatprep.subr.mxu0 0.0
        %992 = vmatpush2.msra.mxu0 0.0
        %993 = vmatprep.subr.mxu0 0.0
        %994 = vmatpush2.msra.mxu0 0.0
        %995 = vmatprep.subr.mxu0 0.0
        %996 = vmatpush2.msra.mxu0 0.0
        %997 = vmatprep.subr.mxu0 0.0
        %998 = vmatpush2.msra.mxu0 0.0
        %999 = vmatprep.subr.mxu0 0.0
        %1000 = vmatpush2.msra.mxu0 0.0
        %1001 = vmatprep.subr.mxu0 0.0
        %1002 = vmatpush2.msra.mxu0 0.0
        %1003 = vmatprep.subr.mxu0 0.0
        %1004 = vmatpush2.msra.mxu0 0.0
        %1005 = vmatprep.subr.mxu0 0.0
        %1006 = vmatpush2.msra.mxu0 0.0
        %1007 = vmatprep.subr.mxu0 0.0
        %1008 = vmatpush2.msra.mxu0 0.0
        %1009 = vmatprep.mubr.f32.mxu0 0.0
        %1010 = vmatmul.mubr.f32.gmra.mxu0 %v943
        %v1011 = vpop.f32.mrf.mxu0
        %v1012 = vadd.f32 %v252, %v1011
        %v1013 = vpop.f32.mrf.mxu0
        %v1014 = vadd.f32 %v252, %v1013
        %1015 = vdwg.mxu0
        %v1018 = vcombine.low %v1012, %v1014
        %v1020 = vunpack.c.l.s4 1966171168
        %v1021 = vunpack.c.0.s8 %v1020
        %v1022 = vlaneseq
        %v1023 = vshrl.u32 %v1022, 7
        %v1024 = vsub.s32 %v1021, %v1023
        %v1025 = vrot.slane %v1018, %v1024
        %v1026 = vcombine.high %v1025, %v1025
        %v1028 = vunpack.c.l.s4 1966171168
        %v1029 = vunpack.c.0.s8 %v1028
        %v1030 = vlaneseq
        %v1031 = vshrl.u32 %v1030, 7
        %v1032 = vsub.s32 %v1029, %v1031
        %v1033 = vrot.slane %v1025, %v1032
        %v1035 = vunpack.c.l.s4 1966171168
        %v1036 = vunpack.c.0.s8 %v1035
        %v1037 = vlaneseq
        %v1038 = vshrl.u32 %v1037, 7
        %v1039 = vsub.s32 %v1036, %v1038
        %v1040 = vrot.slane %v1026, %v1039
        %v1041 = vlaneseq
        %v1042 = vshrl.u32 %v1041, 7
        %v1043 = vsub.s32 0, %v1042
        %v1044 = vrot.slane %v1033, %v1043
        %v1045 = vlaneseq
        %v1046 = vshrl.u32 %v1045, 7
        %v1047 = vsub.s32 1, %v1046
        %v1048 = vrot.slane %v1033, %v1047
        %v1049 = vlaneseq
        %v1050 = vshrl.u32 %v1049, 7
        %v1051 = vsub.s32 0, %v1050
        %v1052 = vrot.slane %v1040, %v1051
        %v1053 = vlaneseq
        %v1054 = vshrl.u32 %v1053, 7
        %v1055 = vsub.s32 1, %v1054
        %v1056 = vrot.slane %v1040, %v1055
        %s1061 = scalar_lea.vmem %s227, 96 [#allocation4]
        %1062 = vst [vmem:[%s1061] sm:$0xff] %v1044
        %1063 = vst.msk [vmem:[%s1061 + $0x8] sm:$0xff] %vm452, %v1048
        %1064 = vst [vmem:[%s1061 + $0x10] sm:$0x3f] %v1044
        %1065 = vst.msk [vmem:[%s1061 + $0x18] sm:$0x3f] %vm455, %v1048
        %1066 = vst [vmem:[%s1061 + $0x100] sm:$0xff] %v1052
        %1067 = vst.msk [vmem:[%s1061 + $0x108] sm:$0xff] %vm452, %v1056
        %1068 = vst [vmem:[%s1061 + $0x110] sm:$0x3f] %v1052
        %1069 = vst.msk [vmem:[%s1061 + $0x118] sm:$0x3f] %vm455, %v1056
        %s1070 = scalar_lea.vmem %s237, 128
        %v1071 = vld [vmem:[%s1070] sm:$0xff]
        %v1072 = vld [vmem:[%s1070 + $0x8] sm:$0xff]
        %v1073 = vld [vmem:[%s1070 + $0x10] sm:$0xff]
        %v1074 = vld [vmem:[%s1070 + $0x18] sm:$0xff]
        %1075 = vmatprep.subr.mxu0 0.0
        %1076 = vmatpush1.msra.mxu0 0.0
        %1077 = vmatprep.subr.mxu0 0.0
        %1078 = vmatpush1.msra.mxu0 0.0
        %1079 = vmatprep.subr.mxu0 0.0
        %1080 = vmatpush1.msra.mxu0 0.0
        %1081 = vmatprep.subr.mxu0 0.0
        %1082 = vmatpush1.msra.mxu0 0.0
        %1083 = vmatprep.subr.mxu0 0.0
        %1084 = vmatpush1.msra.mxu0 0.0
        %1085 = vmatprep.subr.mxu0 0.0
        %1086 = vmatpush1.msra.mxu0 0.0
        %1087 = vmatprep.subr.mxu0 0.0
        %1088 = vmatpush1.msra.mxu0 0.0
        %1089 = vmatprep.subr.mxu0 0.0
        %1090 = vmatpush1.msra.mxu0 0.0
        %1091 = vmatprep.subr.mxu0 0.0
        %1092 = vmatpush1.msra.mxu0 0.0
        %1093 = vmatprep.subr.mxu0 0.0
        %1094 = vmatpush1.msra.mxu0 0.0
        %1095 = vmatprep.subr.mxu0 0.0
        %1096 = vmatpush1.msra.mxu0 0.0
        %1097 = vmatprep.subr.mxu0 0.0
        %1098 = vmatpush1.msra.mxu0 0.0
        %1099 = vmatprep.subr.mxu0 0.0
        %1100 = vmatpush1.msra.mxu0 %v1074
        %1101 = vmatprep.subr.mxu0 0.0
        %1102 = vmatpush1.msra.mxu0 %v1073
        %1103 = vmatprep.subr.mxu0 0.0
        %1104 = vmatpush1.msra.mxu0 %v1072
        %1105 = vmatprep.subr.mxu0 0.0
        %1106 = vmatpush1.msra.mxu0 %v1071
        %1107 = vmatprep.subr.mxu0 0.0
        %1108 = vmatpush2.msra.mxu0 0.0
        %1109 = vmatprep.subr.mxu0 0.0
        %1110 = vmatpush2.msra.mxu0 0.0
        %1111 = vmatprep.subr.mxu0 0.0
        %1112 = vmatpush2.msra.mxu0 0.0
        %1113 = vmatprep.subr.mxu0 0.0
        %1114 = vmatpush2.msra.mxu0 0.0
        %1115 = vmatprep.subr.mxu0 0.0
        %1116 = vmatpush2.msra.mxu0 0.0
        %1117 = vmatprep.subr.mxu0 0.0
        %1118 = vmatpush2.msra.mxu0 0.0
        %1119 = vmatprep.subr.mxu0 0.0
        %1120 = vmatpush2.msra.mxu0 0.0
        %1121 = vmatprep.subr.mxu0 0.0
        %1122 = vmatpush2.msra.mxu0 0.0
        %1123 = vmatprep.subr.mxu0 0.0
        %1124 = vmatpush2.msra.mxu0 0.0
        %1125 = vmatprep.subr.mxu0 0.0
        %1126 = vmatpush2.msra.mxu0 0.0
        %1127 = vmatprep.subr.mxu0 0.0
        %1128 = vmatpush2.msra.mxu0 0.0
        %1129 = vmatprep.subr.mxu0 0.0
        %1130 = vmatpush2.msra.mxu0 0.0
        %1131 = vmatprep.subr.mxu0 0.0
        %1132 = vmatpush2.msra.mxu0 0.0
        %1133 = vmatprep.subr.mxu0 0.0
        %1134 = vmatpush2.msra.mxu0 0.0
        %1135 = vmatprep.subr.mxu0 0.0
        %1136 = vmatpush2.msra.mxu0 0.0
        %1137 = vmatprep.subr.mxu0 0.0
        %1138 = vmatpush2.msra.mxu0 0.0
        %1139 = vmatprep.mubr.f32.mxu0 0.0
        %1140 = vmatmul.mubr.f32.gmra.mxu0 %v259
        %v1141 = vpop.f32.mrf.mxu0
        %v1142 = vadd.f32 0.0, %v1141
        %v1143 = vpop.f32.mrf.mxu0
        %1144 = vdwg.mxu0
        %v1146 = vsel %vm331, %v1142, 0
        %1148 = vmatprep.subr.mxu0 0.0
        %1149 = vmatpush1.msra.mxu0 0.0
        %1150 = vmatprep.subr.mxu0 0.0
        %1151 = vmatpush1.msra.mxu0 0.0
        %1152 = vmatprep.subr.mxu0 0.0
        %1153 = vmatpush1.msra.mxu0 0.0
        %1154 = vmatprep.subr.mxu0 0.0
        %1155 = vmatpush1.msra.mxu0 0.0
        %1156 = vmatprep.subr.mxu0 0.0
        %1157 = vmatpush1.msra.mxu0 0.0
        %1158 = vmatprep.subr.mxu0 0.0
        %1159 = vmatpush1.msra.mxu0 0.0
        %1160 = vmatprep.subr.mxu0 0.0
        %1161 = vmatpush1.msra.mxu0 0.0
        %1162 = vmatprep.subr.mxu0 0.0
        %1163 = vmatpush1.msra.mxu0 0.0
        %1164 = vmatprep.subr.mxu0 0.0
        %1165 = vmatpush1.msra.mxu0 0.0
        %1166 = vmatprep.subr.mxu0 0.0
        %1167 = vmatpush1.msra.mxu0 0.0
        %1168 = vmatprep.subr.mxu0 0.0
        %1169 = vmatpush1.msra.mxu0 0.0
        %1170 = vmatprep.subr.mxu0 0.0
        %1171 = vmatpush1.msra.mxu0 0.0
        %1172 = vmatprep.subr.mxu0 0.0
        %1173 = vmatpush1.msra.mxu0 0.0
        %1174 = vmatprep.subr.mxu0 0.0
        %1175 = vmatpush1.msra.mxu0 0.0
        %1176 = vmatprep.subr.mxu0 %v244
        %1177 = vmatpush1.msra.mxu0 %v243
        %1178 = vmatprep.subr.mxu0 %v242
        %1179 = vmatpush1.msra.mxu0 %v241
        %1180 = vmatprep.subr.mxu0 0.0
        %1181 = vmatpush2.msra.mxu0 0.0
        %1182 = vmatprep.subr.mxu0 0.0
        %1183 = vmatpush2.msra.mxu0 0.0
        %1184 = vmatprep.subr.mxu0 0.0
        %1185 = vmatpush2.msra.mxu0 0.0
        %1186 = vmatprep.subr.mxu0 0.0
        %1187 = vmatpush2.msra.mxu0 0.0
        %1188 = vmatprep.subr.mxu0 0.0
        %1189 = vmatpush2.msra.mxu0 0.0
        %1190 = vmatprep.subr.mxu0 0.0
        %1191 = vmatpush2.msra.mxu0 0.0
        %1192 = vmatprep.subr.mxu0 0.0
        %1193 = vmatpush2.msra.mxu0 0.0
        %1194 = vmatprep.subr.mxu0 0.0
        %1195 = vmatpush2.msra.mxu0 0.0
        %1196 = vmatprep.subr.mxu0 0.0
        %1197 = vmatpush2.msra.mxu0 0.0
        %1198 = vmatprep.subr.mxu0 0.0
        %1199 = vmatpush2.msra.mxu0 0.0
        %1200 = vmatprep.subr.mxu0 0.0
        %1201 = vmatpush2.msra.mxu0 0.0
        %1202 = vmatprep.subr.mxu0 0.0
        %1203 = vmatpush2.msra.mxu0 0.0
        %1204 = vmatprep.subr.mxu0 0.0
        %1205 = vmatpush2.msra.mxu0 0.0
        %1206 = vmatprep.subr.mxu0 0.0
        %1207 = vmatpush2.msra.mxu0 0.0
        %1208 = vmatprep.subr.mxu0 0.0
        %1209 = vmatpush2.msra.mxu0 0.0
        %1210 = vmatprep.subr.mxu0 0.0
        %1211 = vmatpush2.msra.mxu0 0.0
        %1212 = vmatprep.mubr.f32.mxu0 0.0
        %1213 = vmatmul.mubr.f32.gmra.mxu0 %v1146
        %v1214 = vpop.f32.mrf.mxu0
        %v1215 = vadd.f32 %v252, %v1214
        %v1216 = vpop.f32.mrf.mxu0
        %v1217 = vadd.f32 %v252, %v1216
        %1218 = vdwg.mxu0
        %v1221 = vcombine.low %v1215, %v1217
        %v1223 = vunpack.c.l.s4 1966171168
        %v1224 = vunpack.c.0.s8 %v1223
        %v1225 = vlaneseq
        %v1226 = vshrl.u32 %v1225, 7
        %v1227 = vsub.s32 %v1224, %v1226
        %v1228 = vrot.slane %v1221, %v1227
        %v1229 = vcombine.high %v1228, %v1228
        %v1231 = vunpack.c.l.s4 1966171168
        %v1232 = vunpack.c.0.s8 %v1231
        %v1233 = vlaneseq
        %v1234 = vshrl.u32 %v1233, 7
        %v1235 = vsub.s32 %v1232, %v1234
        %v1236 = vrot.slane %v1228, %v1235
        %v1238 = vunpack.c.l.s4 1966171168
        %v1239 = vunpack.c.0.s8 %v1238
        %v1240 = vlaneseq
        %v1241 = vshrl.u32 %v1240, 7
        %v1242 = vsub.s32 %v1239, %v1241
        %v1243 = vrot.slane %v1229, %v1242
        %v1244 = vlaneseq
        %v1245 = vshrl.u32 %v1244, 7
        %v1246 = vsub.s32 0, %v1245
        %v1247 = vrot.slane %v1236, %v1246
        %v1248 = vlaneseq
        %v1249 = vshrl.u32 %v1248, 7
        %v1250 = vsub.s32 1, %v1249
        %v1251 = vrot.slane %v1236, %v1250
        %v1252 = vlaneseq
        %v1253 = vshrl.u32 %v1252, 7
        %v1254 = vsub.s32 0, %v1253
        %v1255 = vrot.slane %v1243, %v1254
        %v1256 = vlaneseq
        %v1257 = vshrl.u32 %v1256, 7
        %v1258 = vsub.s32 1, %v1257
        %v1259 = vrot.slane %v1243, %v1258
        %s1264 = scalar_lea.vmem %s227, 128 [#allocation4]
        %1265 = vst [vmem:[%s1264] sm:$0xff] %v1247
        %1266 = vst.msk [vmem:[%s1264 + $0x8] sm:$0xff] %vm452, %v1251
        %1267 = vst [vmem:[%s1264 + $0x10] sm:$0x3f] %v1247
        %1268 = vst.msk [vmem:[%s1264 + $0x18] sm:$0x3f] %vm455, %v1251
        %1269 = vst [vmem:[%s1264 + $0x100] sm:$0xff] %v1255
        %1270 = vst.msk [vmem:[%s1264 + $0x108] sm:$0xff] %vm452, %v1259
        %1271 = vst [vmem:[%s1264 + $0x110] sm:$0x3f] %v1255
        %1272 = vst.msk [vmem:[%s1264 + $0x118] sm:$0x3f] %vm455, %v1259
        %s1273 = scalar_lea.vmem %s237, 160
        %v1274 = vld [vmem:[%s1273] sm:$0xff]
        %v1275 = vld [vmem:[%s1273 + $0x8] sm:$0xff]
        %v1276 = vld [vmem:[%s1273 + $0x10] sm:$0xff]
        %v1277 = vld [vmem:[%s1273 + $0x18] sm:$0xff]
        %1278 = vmatprep.subr.mxu0 0.0
        %1279 = vmatpush1.msra.mxu0 0.0
        %1280 = vmatprep.subr.mxu0 0.0
        %1281 = vmatpush1.msra.mxu0 0.0
        %1282 = vmatprep.subr.mxu0 0.0
        %1283 = vmatpush1.msra.mxu0 0.0
        %1284 = vmatprep.subr.mxu0 0.0
        %1285 = vmatpush1.msra.mxu0 0.0
        %1286 = vmatprep.subr.mxu0 0.0
        %1287 = vmatpush1.msra.mxu0 0.0
        %1288 = vmatprep.subr.mxu0 0.0
        %1289 = vmatpush1.msra.mxu0 0.0
        %1290 = vmatprep.subr.mxu0 0.0
        %1291 = vmatpush1.msra.mxu0 0.0
        %1292 = vmatprep.subr.mxu0 0.0
        %1293 = vmatpush1.msra.mxu0 0.0
        %1294 = vmatprep.subr.mxu0 0.0
        %1295 = vmatpush1.msra.mxu0 0.0
        %1296 = vmatprep.subr.mxu0 0.0
        %1297 = vmatpush1.msra.mxu0 0.0
        %1298 = vmatprep.subr.mxu0 0.0
        %1299 = vmatpush1.msra.mxu0 0.0
        %1300 = vmatprep.subr.mxu0 0.0
        %1301 = vmatpush1.msra.mxu0 0.0
        %1302 = vmatprep.subr.mxu0 0.0
        %1303 = vmatpush1.msra.mxu0 %v1277
        %1304 = vmatprep.subr.mxu0 0.0
        %1305 = vmatpush1.msra.mxu0 %v1276
        %1306 = vmatprep.subr.mxu0 0.0
        %1307 = vmatpush1.msra.mxu0 %v1275
        %1308 = vmatprep.subr.mxu0 0.0
        %1309 = vmatpush1.msra.mxu0 %v1274
        %1310 = vmatprep.subr.mxu0 0.0
        %1311 = vmatpush2.msra.mxu0 0.0
        %1312 = vmatprep.subr.mxu0 0.0
        %1313 = vmatpush2.msra.mxu0 0.0
        %1314 = vmatprep.subr.mxu0 0.0
        %1315 = vmatpush2.msra.mxu0 0.0
        %1316 = vmatprep.subr.mxu0 0.0
        %1317 = vmatpush2.msra.mxu0 0.0
        %1318 = vmatprep.subr.mxu0 0.0
        %1319 = vmatpush2.msra.mxu0 0.0
        %1320 = vmatprep.subr.mxu0 0.0
        %1321 = vmatpush2.msra.mxu0 0.0
        %1322 = vmatprep.subr.mxu0 0.0
        %1323 = vmatpush2.msra.mxu0 0.0
        %1324 = vmatprep.subr.mxu0 0.0
        %1325 = vmatpush2.msra.mxu0 0.0
        %1326 = vmatprep.subr.mxu0 0.0
        %1327 = vmatpush2.msra.mxu0 0.0
        %1328 = vmatprep.subr.mxu0 0.0
        %1329 = vmatpush2.msra.mxu0 0.0
        %1330 = vmatprep.subr.mxu0 0.0
        %1331 = vmatpush2.msra.mxu0 0.0
        %1332 = vmatprep.subr.mxu0 0.0
        %1333 = vmatpush2.msra.mxu0 0.0
        %1334 = vmatprep.subr.mxu0 0.0
        %1335 = vmatpush2.msra.mxu0 0.0
        %1336 = vmatprep.subr.mxu0 0.0
        %1337 = vmatpush2.msra.mxu0 0.0
        %1338 = vmatprep.subr.mxu0 0.0
        %1339 = vmatpush2.msra.mxu0 0.0
        %1340 = vmatprep.subr.mxu0 0.0
        %1341 = vmatpush2.msra.mxu0 0.0
        %1342 = vmatprep.mubr.f32.mxu0 0.0
        %1343 = vmatmul.mubr.f32.gmra.mxu0 %v259
        %v1344 = vpop.f32.mrf.mxu0
        %v1345 = vadd.f32 0.0, %v1344
        %v1346 = vpop.f32.mrf.mxu0
        %1347 = vdwg.mxu0
        %v1349 = vsel %vm331, %v1345, 0
        %1351 = vmatprep.subr.mxu0 0.0
        %1352 = vmatpush1.msra.mxu0 0.0
        %1353 = vmatprep.subr.mxu0 0.0
        %1354 = vmatpush1.msra.mxu0 0.0
        %1355 = vmatprep.subr.mxu0 0.0
        %1356 = vmatpush1.msra.mxu0 0.0
        %1357 = vmatprep.subr.mxu0 0.0
        %1358 = vmatpush1.msra.mxu0 0.0
        %1359 = vmatprep.subr.mxu0 0.0
        %1360 = vmatpush1.msra.mxu0 0.0
        %1361 = vmatprep.subr.mxu0 0.0
        %1362 = vmatpush1.msra.mxu0 0.0
        %1363 = vmatprep.subr.mxu0 0.0
        %1364 = vmatpush1.msra.mxu0 0.0
        %1365 = vmatprep.subr.mxu0 0.0
        %1366 = vmatpush1.msra.mxu0 0.0
        %1367 = vmatprep.subr.mxu0 0.0
        %1368 = vmatpush1.msra.mxu0 0.0
        %1369 = vmatprep.subr.mxu0 0.0
        %1370 = vmatpush1.msra.mxu0 0.0
        %1371 = vmatprep.subr.mxu0 0.0
        %1372 = vmatpush1.msra.mxu0 0.0
        %1373 = vmatprep.subr.mxu0 0.0
        %1374 = vmatpush1.msra.mxu0 0.0
        %1375 = vmatprep.subr.mxu0 0.0
        %1376 = vmatpush1.msra.mxu0 0.0
        %1377 = vmatprep.subr.mxu0 0.0
        %1378 = vmatpush1.msra.mxu0 0.0
        %1379 = vmatprep.subr.mxu0 %v244
        %1380 = vmatpush1.msra.mxu0 %v243
        %1381 = vmatprep.subr.mxu0 %v242
        %1382 = vmatpush1.msra.mxu0 %v241
        %1383 = vmatprep.subr.mxu0 0.0
        %1384 = vmatpush2.msra.mxu0 0.0
        %1385 = vmatprep.subr.mxu0 0.0
        %1386 = vmatpush2.msra.mxu0 0.0
        %1387 = vmatprep.subr.mxu0 0.0
        %1388 = vmatpush2.msra.mxu0 0.0
        %1389 = vmatprep.subr.mxu0 0.0
        %1390 = vmatpush2.msra.mxu0 0.0
        %1391 = vmatprep.subr.mxu0 0.0
        %1392 = vmatpush2.msra.mxu0 0.0
        %1393 = vmatprep.subr.mxu0 0.0
        %1394 = vmatpush2.msra.mxu0 0.0
        %1395 = vmatprep.subr.mxu0 0.0
        %1396 = vmatpush2.msra.mxu0 0.0
        %1397 = vmatprep.subr.mxu0 0.0
        %1398 = vmatpush2.msra.mxu0 0.0
        %1399 = vmatprep.subr.mxu0 0.0
        %1400 = vmatpush2.msra.mxu0 0.0
        %1401 = vmatprep.subr.mxu0 0.0
        %1402 = vmatpush2.msra.mxu0 0.0
        %1403 = vmatprep.subr.mxu0 0.0
        %1404 = vmatpush2.msra.mxu0 0.0
        %1405 = vmatprep.subr.mxu0 0.0
        %1406 = vmatpush2.msra.mxu0 0.0
        %1407 = vmatprep.subr.mxu0 0.0
        %1408 = vmatpush2.msra.mxu0 0.0
        %1409 = vmatprep.subr.mxu0 0.0
        %1410 = vmatpush2.msra.mxu0 0.0
        %1411 = vmatprep.subr.mxu0 0.0
        %1412 = vmatpush2.msra.mxu0 0.0
        %1413 = vmatprep.subr.mxu0 0.0
        %1414 = vmatpush2.msra.mxu0 0.0
        %1415 = vmatprep.mubr.f32.mxu0 0.0
        %1416 = vmatmul.mubr.f32.gmra.mxu0 %v1349
        %v1417 = vpop.f32.mrf.mxu0
        %v1418 = vadd.f32 %v252, %v1417
        %v1419 = vpop.f32.mrf.mxu0
        %v1420 = vadd.f32 %v252, %v1419
        %1421 = vdwg.mxu0
        %v1424 = vcombine.low %v1418, %v1420
        %v1426 = vunpack.c.l.s4 1966171168
        %v1427 = vunpack.c.0.s8 %v1426
        %v1428 = vlaneseq
        %v1429 = vshrl.u32 %v1428, 7
        %v1430 = vsub.s32 %v1427, %v1429
        %v1431 = vrot.slane %v1424, %v1430
        %v1432 = vcombine.high %v1431, %v1431
        %v1434 = vunpack.c.l.s4 1966171168
        %v1435 = vunpack.c.0.s8 %v1434
        %v1436 = vlaneseq
        %v1437 = vshrl.u32 %v1436, 7
        %v1438 = vsub.s32 %v1435, %v1437
        %v1439 = vrot.slane %v1431, %v1438
        %v1441 = vunpack.c.l.s4 1966171168
        %v1442 = vunpack.c.0.s8 %v1441
        %v1443 = vlaneseq
        %v1444 = vshrl.u32 %v1443, 7
        %v1445 = vsub.s32 %v1442, %v1444
        %v1446 = vrot.slane %v1432, %v1445
        %v1447 = vlaneseq
        %v1448 = vshrl.u32 %v1447, 7
        %v1449 = vsub.s32 0, %v1448
        %v1450 = vrot.slane %v1439, %v1449
        %v1451 = vlaneseq
        %v1452 = vshrl.u32 %v1451, 7
        %v1453 = vsub.s32 1, %v1452
        %v1454 = vrot.slane %v1439, %v1453
        %v1455 = vlaneseq
        %v1456 = vshrl.u32 %v1455, 7
        %v1457 = vsub.s32 0, %v1456
        %v1458 = vrot.slane %v1446, %v1457
        %v1459 = vlaneseq
        %v1460 = vshrl.u32 %v1459, 7
        %v1461 = vsub.s32 1, %v1460
        %v1462 = vrot.slane %v1446, %v1461
        %s1467 = scalar_lea.vmem %s227, 160 [#allocation4]
        %1468 = vst [vmem:[%s1467] sm:$0xff] %v1450
        %1469 = vst.msk [vmem:[%s1467 + $0x8] sm:$0xff] %vm452, %v1454
        %1470 = vst [vmem:[%s1467 + $0x10] sm:$0x3f] %v1450
        %1471 = vst.msk [vmem:[%s1467 + $0x18] sm:$0x3f] %vm455, %v1454
        %1472 = vst [vmem:[%s1467 + $0x100] sm:$0xff] %v1458
        %1473 = vst.msk [vmem:[%s1467 + $0x108] sm:$0xff] %vm452, %v1462
        %1474 = vst [vmem:[%s1467 + $0x110] sm:$0x3f] %v1458
        %1475 = vst.msk [vmem:[%s1467 + $0x118] sm:$0x3f] %vm455, %v1462
        %s1476 = scalar_lea.vmem %s237, 192
        %v1477 = vld [vmem:[%s1476] sm:$0xff]
        %v1478 = vld [vmem:[%s1476 + $0x8] sm:$0xff]
        %v1479 = vld [vmem:[%s1476 + $0x10] sm:$0xff]
        %v1480 = vld [vmem:[%s1476 + $0x18] sm:$0xff]
        %1481 = vmatprep.subr.mxu0 0.0
        %1482 = vmatpush1.msra.mxu0 0.0
        %1483 = vmatprep.subr.mxu0 0.0
        %1484 = vmatpush1.msra.mxu0 0.0
        %1485 = vmatprep.subr.mxu0 0.0
        %1486 = vmatpush1.msra.mxu0 0.0
        %1487 = vmatprep.subr.mxu0 0.0
        %1488 = vmatpush1.msra.mxu0 0.0
        %1489 = vmatprep.subr.mxu0 0.0
        %1490 = vmatpush1.msra.mxu0 0.0
        %1491 = vmatprep.subr.mxu0 0.0
        %1492 = vmatpush1.msra.mxu0 0.0
        %1493 = vmatprep.subr.mxu0 0.0
        %1494 = vmatpush1.msra.mxu0 0.0
        %1495 = vmatprep.subr.mxu0 0.0
        %1496 = vmatpush1.msra.mxu0 0.0
        %1497 = vmatprep.subr.mxu0 0.0
        %1498 = vmatpush1.msra.mxu0 0.0
        %1499 = vmatprep.subr.mxu0 0.0
        %1500 = vmatpush1.msra.mxu0 0.0
        %1501 = vmatprep.subr.mxu0 0.0
        %1502 = vmatpush1.msra.mxu0 0.0
        %1503 = vmatprep.subr.mxu0 0.0
        %1504 = vmatpush1.msra.mxu0 0.0
        %1505 = vmatprep.subr.mxu0 0.0
        %1506 = vmatpush1.msra.mxu0 %v1480
        %1507 = vmatprep.subr.mxu0 0.0
        %1508 = vmatpush1.msra.mxu0 %v1479
        %1509 = vmatprep.subr.mxu0 0.0
        %1510 = vmatpush1.msra.mxu0 %v1478
        %1511 = vmatprep.subr.mxu0 0.0
        %1512 = vmatpush1.msra.mxu0 %v1477
        %1513 = vmatprep.subr.mxu0 0.0
        %1514 = vmatpush2.msra.mxu0 0.0
        %1515 = vmatprep.subr.mxu0 0.0
        %1516 = vmatpush2.msra.mxu0 0.0
        %1517 = vmatprep.subr.mxu0 0.0
        %1518 = vmatpush2.msra.mxu0 0.0
        %1519 = vmatprep.subr.mxu0 0.0
        %1520 = vmatpush2.msra.mxu0 0.0
        %1521 = vmatprep.subr.mxu0 0.0
        %1522 = vmatpush2.msra.mxu0 0.0
        %1523 = vmatprep.subr.mxu0 0.0
        %1524 = vmatpush2.msra.mxu0 0.0
        %1525 = vmatprep.subr.mxu0 0.0
        %1526 = vmatpush2.msra.mxu0 0.0
        %1527 = vmatprep.subr.mxu0 0.0
        %1528 = vmatpush2.msra.mxu0 0.0
        %1529 = vmatprep.subr.mxu0 0.0
        %1530 = vmatpush2.msra.mxu0 0.0
        %1531 = vmatprep.subr.mxu0 0.0
        %1532 = vmatpush2.msra.mxu0 0.0
        %1533 = vmatprep.subr.mxu0 0.0
        %1534 = vmatpush2.msra.mxu0 0.0
        %1535 = vmatprep.subr.mxu0 0.0
        %1536 = vmatpush2.msra.mxu0 0.0
        %1537 = vmatprep.subr.mxu0 0.0
        %1538 = vmatpush2.msra.mxu0 0.0
        %1539 = vmatprep.subr.mxu0 0.0
        %1540 = vmatpush2.msra.mxu0 0.0
        %1541 = vmatprep.subr.mxu0 0.0
        %1542 = vmatpush2.msra.mxu0 0.0
        %1543 = vmatprep.subr.mxu0 0.0
        %1544 = vmatpush2.msra.mxu0 0.0
        %1545 = vmatprep.mubr.f32.mxu0 0.0
        %1546 = vmatmul.mubr.f32.gmra.mxu0 %v259
        %v1547 = vpop.f32.mrf.mxu0
        %v1548 = vadd.f32 0.0, %v1547
        %v1549 = vpop.f32.mrf.mxu0
        %1550 = vdwg.mxu0
        %v1552 = vsel %vm331, %v1548, 0
        %1554 = vmatprep.subr.mxu0 0.0
        %1555 = vmatpush1.msra.mxu0 0.0
        %1556 = vmatprep.subr.mxu0 0.0
        %1557 = vmatpush1.msra.mxu0 0.0
        %1558 = vmatprep.subr.mxu0 0.0
        %1559 = vmatpush1.msra.mxu0 0.0
        %1560 = vmatprep.subr.mxu0 0.0
        %1561 = vmatpush1.msra.mxu0 0.0
        %1562 = vmatprep.subr.mxu0 0.0
        %1563 = vmatpush1.msra.mxu0 0.0
        %1564 = vmatprep.subr.mxu0 0.0
        %1565 = vmatpush1.msra.mxu0 0.0
        %1566 = vmatprep.subr.mxu0 0.0
        %1567 = vmatpush1.msra.mxu0 0.0
        %1568 = vmatprep.subr.mxu0 0.0
        %1569 = vmatpush1.msra.mxu0 0.0
        %1570 = vmatprep.subr.mxu0 0.0
        %1571 = vmatpush1.msra.mxu0 0.0
        %1572 = vmatprep.subr.mxu0 0.0
        %1573 = vmatpush1.msra.mxu0 0.0
        %1574 = vmatprep.subr.mxu0 0.0
        %1575 = vmatpush1.msra.mxu0 0.0
        %1576 = vmatprep.subr.mxu0 0.0
        %1577 = vmatpush1.msra.mxu0 0.0
        %1578 = vmatprep.subr.mxu0 0.0
        %1579 = vmatpush1.msra.mxu0 0.0
        %1580 = vmatprep.subr.mxu0 0.0
        %1581 = vmatpush1.msra.mxu0 0.0
        %1582 = vmatprep.subr.mxu0 %v244
        %1583 = vmatpush1.msra.mxu0 %v243
        %1584 = vmatprep.subr.mxu0 %v242
        %1585 = vmatpush1.msra.mxu0 %v241
        %1586 = vmatprep.subr.mxu0 0.0
        %1587 = vmatpush2.msra.mxu0 0.0
        %1588 = vmatprep.subr.mxu0 0.0
        %1589 = vmatpush2.msra.mxu0 0.0
        %1590 = vmatprep.subr.mxu0 0.0
        %1591 = vmatpush2.msra.mxu0 0.0
        %1592 = vmatprep.subr.mxu0 0.0
        %1593 = vmatpush2.msra.mxu0 0.0
        %1594 = vmatprep.subr.mxu0 0.0
        %1595 = vmatpush2.msra.mxu0 0.0
        %1596 = vmatprep.subr.mxu0 0.0
        %1597 = vmatpush2.msra.mxu0 0.0
        %1598 = vmatprep.subr.mxu0 0.0
        %1599 = vmatpush2.msra.mxu0 0.0
        %1600 = vmatprep.subr.mxu0 0.0
        %1601 = vmatpush2.msra.mxu0 0.0
        %1602 = vmatprep.subr.mxu0 0.0
        %1603 = vmatpush2.msra.mxu0 0.0
        %1604 = vmatprep.subr.mxu0 0.0
        %1605 = vmatpush2.msra.mxu0 0.0
        %1606 = vmatprep.subr.mxu0 0.0
        %1607 = vmatpush2.msra.mxu0 0.0
        %1608 = vmatprep.subr.mxu0 0.0
        %1609 = vmatpush2.msra.mxu0 0.0
        %1610 = vmatprep.subr.mxu0 0.0
        %1611 = vmatpush2.msra.mxu0 0.0
        %1612 = vmatprep.subr.mxu0 0.0
        %1613 = vmatpush2.msra.mxu0 0.0
        %1614 = vmatprep.subr.mxu0 0.0
        %1615 = vmatpush2.msra.mxu0 0.0
        %1616 = vmatprep.subr.mxu0 0.0
        %1617 = vmatpush2.msra.mxu0 0.0
        %1618 = vmatprep.mubr.f32.mxu0 0.0
        %1619 = vmatmul.mubr.f32.gmra.mxu0 %v1552
        %v1620 = vpop.f32.mrf.mxu0
        %v1621 = vadd.f32 %v252, %v1620
        %v1622 = vpop.f32.mrf.mxu0
        %v1623 = vadd.f32 %v252, %v1622
        %1624 = vdwg.mxu0
        %v1627 = vcombine.low %v1621, %v1623
        %v1629 = vunpack.c.l.s4 1966171168
        %v1630 = vunpack.c.0.s8 %v1629
        %v1631 = vlaneseq
        %v1632 = vshrl.u32 %v1631, 7
        %v1633 = vsub.s32 %v1630, %v1632
        %v1634 = vrot.slane %v1627, %v1633
        %v1635 = vcombine.high %v1634, %v1634
        %v1637 = vunpack.c.l.s4 1966171168
        %v1638 = vunpack.c.0.s8 %v1637
        %v1639 = vlaneseq
        %v1640 = vshrl.u32 %v1639, 7
        %v1641 = vsub.s32 %v1638, %v1640
        %v1642 = vrot.slane %v1634, %v1641
        %v1644 = vunpack.c.l.s4 1966171168
        %v1645 = vunpack.c.0.s8 %v1644
        %v1646 = vlaneseq
        %v1647 = vshrl.u32 %v1646, 7
        %v1648 = vsub.s32 %v1645, %v1647
        %v1649 = vrot.slane %v1635, %v1648
        %v1650 = vlaneseq
        %v1651 = vshrl.u32 %v1650, 7
        %v1652 = vsub.s32 0, %v1651
        %v1653 = vrot.slane %v1642, %v1652
        %v1654 = vlaneseq
        %v1655 = vshrl.u32 %v1654, 7
        %v1656 = vsub.s32 1, %v1655
        %v1657 = vrot.slane %v1642, %v1656
        %v1658 = vlaneseq
        %v1659 = vshrl.u32 %v1658, 7
        %v1660 = vsub.s32 0, %v1659
        %v1661 = vrot.slane %v1649, %v1660
        %v1662 = vlaneseq
        %v1663 = vshrl.u32 %v1662, 7
        %v1664 = vsub.s32 1, %v1663
        %v1665 = vrot.slane %v1649, %v1664
        %s1670 = scalar_lea.vmem %s227, 192 [#allocation4]
        %1671 = vst [vmem:[%s1670] sm:$0xff] %v1653
        %1672 = vst.msk [vmem:[%s1670 + $0x8] sm:$0xff] %vm452, %v1657
        %1673 = vst [vmem:[%s1670 + $0x10] sm:$0x3f] %v1653
        %1674 = vst.msk [vmem:[%s1670 + $0x18] sm:$0x3f] %vm455, %v1657
        %1675 = vst [vmem:[%s1670 + $0x100] sm:$0xff] %v1661
        %1676 = vst.msk [vmem:[%s1670 + $0x108] sm:$0xff] %vm452, %v1665
        %1677 = vst [vmem:[%s1670 + $0x110] sm:$0x3f] %v1661
        %1678 = vst.msk [vmem:[%s1670 + $0x118] sm:$0x3f] %vm455, %v1665
        %s1679 = scalar_lea.vmem %s237, 224
        %v1680 = vld [vmem:[%s1679] sm:$0xff]
        %v1681 = vld [vmem:[%s1679 + $0x8] sm:$0xff]
        %v1682 = vld [vmem:[%s1679 + $0x10] sm:$0xff]
        %v1683 = vld [vmem:[%s1679 + $0x18] sm:$0xff]
        %1684 = vmatprep.subr.mxu0 0.0
        %1685 = vmatpush1.msra.mxu0 0.0
        %1686 = vmatprep.subr.mxu0 0.0
        %1687 = vmatpush1.msra.mxu0 0.0
        %1688 = vmatprep.subr.mxu0 0.0
        %1689 = vmatpush1.msra.mxu0 0.0
        %1690 = vmatprep.subr.mxu0 0.0
        %1691 = vmatpush1.msra.mxu0 0.0
        %1692 = vmatprep.subr.mxu0 0.0
        %1693 = vmatpush1.msra.mxu0 0.0
        %1694 = vmatprep.subr.mxu0 0.0
        %1695 = vmatpush1.msra.mxu0 0.0
        %1696 = vmatprep.subr.mxu0 0.0
        %1697 = vmatpush1.msra.mxu0 0.0
        %1698 = vmatprep.subr.mxu0 0.0
        %1699 = vmatpush1.msra.mxu0 0.0
        %1700 = vmatprep.subr.mxu0 0.0
        %1701 = vmatpush1.msra.mxu0 0.0
        %1702 = vmatprep.subr.mxu0 0.0
        %1703 = vmatpush1.msra.mxu0 0.0
        %1704 = vmatprep.subr.mxu0 0.0
        %1705 = vmatpush1.msra.mxu0 0.0
        %1706 = vmatprep.subr.mxu0 0.0
        %1707 = vmatpush1.msra.mxu0 0.0
        %1708 = vmatprep.subr.mxu0 0.0
        %1709 = vmatpush1.msra.mxu0 %v1683
        %1710 = vmatprep.subr.mxu0 0.0
        %1711 = vmatpush1.msra.mxu0 %v1682
        %1712 = vmatprep.subr.mxu0 0.0
        %1713 = vmatpush1.msra.mxu0 %v1681
        %1714 = vmatprep.subr.mxu0 0.0
        %1715 = vmatpush1.msra.mxu0 %v1680
        %1716 = vmatprep.subr.mxu0 0.0
        %1717 = vmatpush2.msra.mxu0 0.0
        %1718 = vmatprep.subr.mxu0 0.0
        %1719 = vmatpush2.msra.mxu0 0.0
        %1720 = vmatprep.subr.mxu0 0.0
        %1721 = vmatpush2.msra.mxu0 0.0
        %1722 = vmatprep.subr.mxu0 0.0
        %1723 = vmatpush2.msra.mxu0 0.0
        %1724 = vmatprep.subr.mxu0 0.0
        %1725 = vmatpush2.msra.mxu0 0.0
        %1726 = vmatprep.subr.mxu0 0.0
        %1727 = vmatpush2.msra.mxu0 0.0
        %1728 = vmatprep.subr.mxu0 0.0
        %1729 = vmatpush2.msra.mxu0 0.0
        %1730 = vmatprep.subr.mxu0 0.0
        %1731 = vmatpush2.msra.mxu0 0.0
        %1732 = vmatprep.subr.mxu0 0.0
        %1733 = vmatpush2.msra.mxu0 0.0
        %1734 = vmatprep.subr.mxu0 0.0
        %1735 = vmatpush2.msra.mxu0 0.0
        %1736 = vmatprep.subr.mxu0 0.0
        %1737 = vmatpush2.msra.mxu0 0.0
        %1738 = vmatprep.subr.mxu0 0.0
        %1739 = vmatpush2.msra.mxu0 0.0
        %1740 = vmatprep.subr.mxu0 0.0
        %1741 = vmatpush2.msra.mxu0 0.0
        %1742 = vmatprep.subr.mxu0 0.0
        %1743 = vmatpush2.msra.mxu0 0.0
        %1744 = vmatprep.subr.mxu0 0.0
        %1745 = vmatpush2.msra.mxu0 0.0
        %1746 = vmatprep.subr.mxu0 0.0
        %1747 = vmatpush2.msra.mxu0 0.0
        %1748 = vmatprep.mubr.f32.mxu0 0.0
        %1749 = vmatmul.mubr.f32.gmra.mxu0 %v259
        %v1750 = vpop.f32.mrf.mxu0
        %v1751 = vadd.f32 0.0, %v1750
        %v1752 = vpop.f32.mrf.mxu0
        %1753 = vdwg.mxu0
        %v1755 = vsel %vm331, %v1751, 0
        %1757 = vmatprep.subr.mxu0 0.0
        %1758 = vmatpush1.msra.mxu0 0.0
        %1759 = vmatprep.subr.mxu0 0.0
        %1760 = vmatpush1.msra.mxu0 0.0
        %1761 = vmatprep.subr.mxu0 0.0
        %1762 = vmatpush1.msra.mxu0 0.0
        %1763 = vmatprep.subr.mxu0 0.0
        %1764 = vmatpush1.msra.mxu0 0.0
        %1765 = vmatprep.subr.mxu0 0.0
        %1766 = vmatpush1.msra.mxu0 0.0
        %1767 = vmatprep.subr.mxu0 0.0
        %1768 = vmatpush1.msra.mxu0 0.0
        %1769 = vmatprep.subr.mxu0 0.0
        %1770 = vmatpush1.msra.mxu0 0.0
        %1771 = vmatprep.subr.mxu0 0.0
        %1772 = vmatpush1.msra.mxu0 0.0
        %1773 = vmatprep.subr.mxu0 0.0
        %1774 = vmatpush1.msra.mxu0 0.0
        %1775 = vmatprep.subr.mxu0 0.0
        %1776 = vmatpush1.msra.mxu0 0.0
        %1777 = vmatprep.subr.mxu0 0.0
        %1778 = vmatpush1.msra.mxu0 0.0
        %1779 = vmatprep.subr.mxu0 0.0
        %1780 = vmatpush1.msra.mxu0 0.0
        %1781 = vmatprep.subr.mxu0 0.0
        %1782 = vmatpush1.msra.mxu0 0.0
        %1783 = vmatprep.subr.mxu0 0.0
        %1784 = vmatpush1.msra.mxu0 0.0
        %1785 = vmatprep.subr.mxu0 %v244
        %1786 = vmatpush1.msra.mxu0 %v243
        %1787 = vmatprep.subr.mxu0 %v242
        %1788 = vmatpush1.msra.mxu0 %v241
        %1789 = vmatprep.subr.mxu0 0.0
        %1790 = vmatpush2.msra.mxu0 0.0
        %1791 = vmatprep.subr.mxu0 0.0
        %1792 = vmatpush2.msra.mxu0 0.0
        %1793 = vmatprep.subr.mxu0 0.0
        %1794 = vmatpush2.msra.mxu0 0.0
        %1795 = vmatprep.subr.mxu0 0.0
        %1796 = vmatpush2.msra.mxu0 0.0
        %1797 = vmatprep.subr.mxu0 0.0
        %1798 = vmatpush2.msra.mxu0 0.0
        %1799 = vmatprep.subr.mxu0 0.0
        %1800 = vmatpush2.msra.mxu0 0.0
        %1801 = vmatprep.subr.mxu0 0.0
        %1802 = vmatpush2.msra.mxu0 0.0
        %1803 = vmatprep.subr.mxu0 0.0
        %1804 = vmatpush2.msra.mxu0 0.0
        %1805 = vmatprep.subr.mxu0 0.0
        %1806 = vmatpush2.msra.mxu0 0.0
        %1807 = vmatprep.subr.mxu0 0.0
        %1808 = vmatpush2.msra.mxu0 0.0
        %1809 = vmatprep.subr.mxu0 0.0
        %1810 = vmatpush2.msra.mxu0 0.0
        %1811 = vmatprep.subr.mxu0 0.0
        %1812 = vmatpush2.msra.mxu0 0.0
        %1813 = vmatprep.subr.mxu0 0.0
        %1814 = vmatpush2.msra.mxu0 0.0
        %1815 = vmatprep.subr.mxu0 0.0
        %1816 = vmatpush2.msra.mxu0 0.0
        %1817 = vmatprep.subr.mxu0 0.0
        %1818 = vmatpush2.msra.mxu0 0.0
        %1819 = vmatprep.subr.mxu0 0.0
        %1820 = vmatpush2.msra.mxu0 0.0
        %1821 = vmatprep.mubr.f32.mxu0 0.0
        %1822 = vmatmul.mubr.f32.gmra.mxu0 %v1755
        %v1823 = vpop.f32.mrf.mxu0
        %v1824 = vadd.f32 %v252, %v1823
        %v1825 = vpop.f32.mrf.mxu0
        %v1826 = vadd.f32 %v252, %v1825
        %1827 = vdwg.mxu0
        %v1830 = vcombine.low %v1824, %v1826
        %v1832 = vunpack.c.l.s4 1966171168
        %v1833 = vunpack.c.0.s8 %v1832
        %v1834 = vlaneseq
        %v1835 = vshrl.u32 %v1834, 7
        %v1836 = vsub.s32 %v1833, %v1835
        %v1837 = vrot.slane %v1830, %v1836
        %v1838 = vcombine.high %v1837, %v1837
        %v1840 = vunpack.c.l.s4 1966171168
        %v1841 = vunpack.c.0.s8 %v1840
        %v1842 = vlaneseq
        %v1843 = vshrl.u32 %v1842, 7
        %v1844 = vsub.s32 %v1841, %v1843
        %v1845 = vrot.slane %v1837, %v1844
        %v1847 = vunpack.c.l.s4 1966171168
        %v1848 = vunpack.c.0.s8 %v1847
        %v1849 = vlaneseq
        %v1850 = vshrl.u32 %v1849, 7
        %v1851 = vsub.s32 %v1848, %v1850
        %v1852 = vrot.slane %v1838, %v1851
        %v1853 = vlaneseq
        %v1854 = vshrl.u32 %v1853, 7
        %v1855 = vsub.s32 0, %v1854
        %v1856 = vrot.slane %v1845, %v1855
        %v1857 = vlaneseq
        %v1858 = vshrl.u32 %v1857, 7
        %v1859 = vsub.s32 1, %v1858
        %v1860 = vrot.slane %v1845, %v1859
        %v1861 = vlaneseq
        %v1862 = vshrl.u32 %v1861, 7
        %v1863 = vsub.s32 0, %v1862
        %v1864 = vrot.slane %v1852, %v1863
        %v1865 = vlaneseq
        %v1866 = vshrl.u32 %v1865, 7
        %v1867 = vsub.s32 1, %v1866
        %v1868 = vrot.slane %v1852, %v1867
        %s1873 = scalar_lea.vmem %s227, 224 [#allocation4]
        %1874 = vst [vmem:[%s1873] sm:$0xff] %v1856
        %1875 = vst.msk [vmem:[%s1873 + $0x8] sm:$0xff] %vm452, %v1860
        %1876 = vst [vmem:[%s1873 + $0x10] sm:$0x3f] %v1856
        %1877 = vst.msk [vmem:[%s1873 + $0x18] sm:$0x3f] %vm455, %v1860
        %1878 = vst [vmem:[%s1873 + $0x100] sm:$0xff] %v1864
        %1879 = vst.msk [vmem:[%s1873 + $0x108] sm:$0xff] %vm452, %v1868
        %1880 = vst [vmem:[%s1873 + $0x110] sm:$0x3f] %v1864
        %1881 = vst.msk [vmem:[%s1873 + $0x118] sm:$0x3f] %vm455, %v1868
        %s1882 = sand.u32 %s129, 1
        %s1883 = sand.u32 %s129, 1
        %s1884 = smul.addr %s1883, 512
        %s1885 = scalar_lea.vmem [#allocation4], %s1884
        // Predicated region
        $region41: #{classification_head_forward.1} parent=35 // pred_check
          %p1886 = pneg %p139
        $region42: #{classification_head_forward.1} parent=35 // pred_check_branch
          %1888 = sbr.rel (%p1886) target = $region44
        $region43: #{classification_head_forward.1} parent=35 // pred_region
          %s1889 = smul.u32 8, %s21
          %s1890 = smul.addr %s1889, 4
          %s1891 = smul.addr %s20, 128
          %s1892 = sadd.s32 %s1890, %s1891
          %s1893 = smul.addr %s1892, 8
          %s1894 = scalar_lea.vmem %s4, %s1893
          // Predicated region
          $region45: #{classification_head_forward.1} parent=43 // pred_check
            _
          $region46: #{classification_head_forward.1} parent=43 // pred_check_branch
            %1896 = sbr.rel (0) target = $region48
          $region47: #{classification_head_forward.1} parent=43 // pred_region
            // Predicated region
            $region49: #{classification_head_forward.1} parent=47 // pred_check
              _
            $region50: #{classification_head_forward.1} parent=47 // pred_check_branch
              %1898 = sbr.rel (0) target = $region52
            $region51: #{classification_head_forward.1} parent=47 // pred_region
              loop: start=0, step=1, limit=1
              $region53: #{classification_head_forward.1} parent=51 // loop_pre_header
                _
              $region54: #{classification_head_forward.1} parent=51 // loop_header
                %s1900 = sphi 0, %s1904
                %p1901 = scmp.ge.s32.totalorder %s1900, 1
                %s1905 = sphi %s1885, %s1885
                %s1906 = sphi %s1894, %s1894
              $region55: #{classification_head_forward.1} parent=51 // loop_header_branch
                %1903 = sbr.rel (%p1901) target = $region59
              $region56: #{classification_head_forward.1} parent=51 // loop_body
                %v1907 = vld [vmem:[%s1905] sm:$0xff]
                %1908 = vst [vmem:[%s1906] sm:$0xff] %v1907
                %v1909 = vld [vmem:[%s1905 + $0x8] sm:$0xff]
                %1910 = vst [vmem:[%s1906 + $0x8] sm:$0xff] %v1909
                %v1911 = vld [vmem:[%s1905 + $0x10] sm:$0xff]
                %1912 = vst [vmem:[%s1906 + $0x10] sm:$0xff] %v1911
                %v1913 = vld [vmem:[%s1905 + $0x18] sm:$0xff]
                %1914 = vst [vmem:[%s1906 + $0x18] sm:$0xff] %v1913
                %v1915 = vld [vmem:[%s1905 + $0x20] sm:$0xff]
                %1916 = vst [vmem:[%s1906 + $0x20] sm:$0xff] %v1915
                %v1917 = vld [vmem:[%s1905 + $0x28] sm:$0xff]
                %1918 = vst [vmem:[%s1906 + $0x28] sm:$0xff] %v1917
                %v1919 = vld [vmem:[%s1905 + $0x30] sm:$0xff]
                %1920 = vst [vmem:[%s1906 + $0x30] sm:$0xff] %v1919
                %v1921 = vld [vmem:[%s1905 + $0x38] sm:$0xff]
                %1922 = vst [vmem:[%s1906 + $0x38] sm:$0xff] %v1921
                %v1923 = vld [vmem:[%s1905 + $0x40] sm:$0xff]
                %1924 = vst [vmem:[%s1906 + $0x40] sm:$0xff] %v1923
                %v1925 = vld [vmem:[%s1905 + $0x48] sm:$0xff]
                %1926 = vst [vmem:[%s1906 + $0x48] sm:$0xff] %v1925
                %v1927 = vld [vmem:[%s1905 + $0x50] sm:$0xff]
                %1928 = vst [vmem:[%s1906 + $0x50] sm:$0xff] %v1927
                %v1929 = vld [vmem:[%s1905 + $0x58] sm:$0xff]
                %1930 = vst [vmem:[%s1906 + $0x58] sm:$0xff] %v1929
                %v1931 = vld [vmem:[%s1905 + $0x60] sm:$0xff]
                %1932 = vst [vmem:[%s1906 + $0x60] sm:$0xff] %v1931
                %v1933 = vld [vmem:[%s1905 + $0x68] sm:$0xff]
                %1934 = vst [vmem:[%s1906 + $0x68] sm:$0xff] %v1933
                %v1935 = vld [vmem:[%s1905 + $0x70] sm:$0xff]
                %1936 = vst [vmem:[%s1906 + $0x70] sm:$0xff] %v1935
                %v1937 = vld [vmem:[%s1905 + $0x78] sm:$0xff]
                %1938 = vst [vmem:[%s1906 + $0x78] sm:$0xff] %v1937
                %v1939 = vld [vmem:[%s1905 + $0x80] sm:$0xff]
                %1940 = vst [vmem:[%s1906 + $0x80] sm:$0xff] %v1939
                %v1941 = vld [vmem:[%s1905 + $0x88] sm:$0xff]
                %1942 = vst [vmem:[%s1906 + $0x88] sm:$0xff] %v1941
                %v1943 = vld [vmem:[%s1905 + $0x90] sm:$0xff]
                %1944 = vst [vmem:[%s1906 + $0x90] sm:$0xff] %v1943
                %v1945 = vld [vmem:[%s1905 + $0x98] sm:$0xff]
                %1946 = vst [vmem:[%s1906 + $0x98] sm:$0xff] %v1945
                %v1947 = vld [vmem:[%s1905 + $0xa0] sm:$0xff]
                %1948 = vst [vmem:[%s1906 + $0xa0] sm:$0xff] %v1947
                %v1949 = vld [vmem:[%s1905 + $0xa8] sm:$0xff]
                %1950 = vst [vmem:[%s1906 + $0xa8] sm:$0xff] %v1949
                %v1951 = vld [vmem:[%s1905 + $0xb0] sm:$0xff]
                %1952 = vst [vmem:[%s1906 + $0xb0] sm:$0xff] %v1951
                %v1953 = vld [vmem:[%s1905 + $0xb8] sm:$0xff]
                %1954 = vst [vmem:[%s1906 + $0xb8] sm:$0xff] %v1953
                %v1955 = vld [vmem:[%s1905 + $0xc0] sm:$0xff]
                %1956 = vst [vmem:[%s1906 + $0xc0] sm:$0xff] %v1955
                %v1957 = vld [vmem:[%s1905 + $0xc8] sm:$0xff]
                %1958 = vst [vmem:[%s1906 + $0xc8] sm:$0xff] %v1957
                %v1959 = vld [vmem:[%s1905 + $0xd0] sm:$0xff]
                %1960 = vst [vmem:[%s1906 + $0xd0] sm:$0xff] %v1959
                %v1961 = vld [vmem:[%s1905 + $0xd8] sm:$0xff]
                %1962 = vst [vmem:[%s1906 + $0xd8] sm:$0xff] %v1961
                %v1963 = vld [vmem:[%s1905 + $0xe0] sm:$0xff]
                %1964 = vst [vmem:[%s1906 + $0xe0] sm:$0xff] %v1963
                %v1965 = vld [vmem:[%s1905 + $0xe8] sm:$0xff]
                %1966 = vst [vmem:[%s1906 + $0xe8] sm:$0xff] %v1965
                %v1967 = vld [vmem:[%s1905 + $0xf0] sm:$0xff]
                %1968 = vst [vmem:[%s1906 + $0xf0] sm:$0xff] %v1967
                %v1969 = vld [vmem:[%s1905 + $0xf8] sm:$0xff]
                %1970 = vst [vmem:[%s1906 + $0xf8] sm:$0xff] %v1969
                %v1971 = vld [vmem:[%s1905 + $0x100] sm:$0xff]
                %1972 = vst [vmem:[%s1906 + $0x200] sm:$0xff] %v1971
                %v1973 = vld [vmem:[%s1905 + $0x108] sm:$0xff]
                %1974 = vst [vmem:[%s1906 + $0x208] sm:$0xff] %v1973
                %v1975 = vld [vmem:[%s1905 + $0x110] sm:$0xff]
                %1976 = vst [vmem:[%s1906 + $0x210] sm:$0xff] %v1975
                %v1977 = vld [vmem:[%s1905 + $0x118] sm:$0xff]
                %1978 = vst [vmem:[%s1906 + $0x218] sm:$0xff] %v1977
                %v1979 = vld [vmem:[%s1905 + $0x120] sm:$0xff]
                %1980 = vst [vmem:[%s1906 + $0x220] sm:$0xff] %v1979
                %v1981 = vld [vmem:[%s1905 + $0x128] sm:$0xff]
                %1982 = vst [vmem:[%s1906 + $0x228] sm:$0xff] %v1981
                %v1983 = vld [vmem:[%s1905 + $0x130] sm:$0xff]
                %1984 = vst [vmem:[%s1906 + $0x230] sm:$0xff] %v1983
                %v1985 = vld [vmem:[%s1905 + $0x138] sm:$0xff]
                %1986 = vst [vmem:[%s1906 + $0x238] sm:$0xff] %v1985
                %v1987 = vld [vmem:[%s1905 + $0x140] sm:$0xff]
                %1988 = vst [vmem:[%s1906 + $0x240] sm:$0xff] %v1987
                %v1989 = vld [vmem:[%s1905 + $0x148] sm:$0xff]
                %1990 = vst [vmem:[%s1906 + $0x248] sm:$0xff] %v1989
                %v1991 = vld [vmem:[%s1905 + $0x150] sm:$0xff]
                %1992 = vst [vmem:[%s1906 + $0x250] sm:$0xff] %v1991
                %v1993 = vld [vmem:[%s1905 + $0x158] sm:$0xff]
                %1994 = vst [vmem:[%s1906 + $0x258] sm:$0xff] %v1993
                %v1995 = vld [vmem:[%s1905 + $0x160] sm:$0xff]
                %1996 = vst [vmem:[%s1906 + $0x260] sm:$0xff] %v1995
                %v1997 = vld [vmem:[%s1905 + $0x168] sm:$0xff]
                %1998 = vst [vmem:[%s1906 + $0x268] sm:$0xff] %v1997
                %v1999 = vld [vmem:[%s1905 + $0x170] sm:$0xff]
                %2000 = vst [vmem:[%s1906 + $0x270] sm:$0xff] %v1999
                %v2001 = vld [vmem:[%s1905 + $0x178] sm:$0xff]
                %2002 = vst [vmem:[%s1906 + $0x278] sm:$0xff] %v2001
                %v2003 = vld [vmem:[%s1905 + $0x180] sm:$0xff]
                %2004 = vst [vmem:[%s1906 + $0x280] sm:$0xff] %v2003
                %v2005 = vld [vmem:[%s1905 + $0x188] sm:$0xff]
                %2006 = vst [vmem:[%s1906 + $0x288] sm:$0xff] %v2005
                %v2007 = vld [vmem:[%s1905 + $0x190] sm:$0xff]
                %2008 = vst [vmem:[%s1906 + $0x290] sm:$0xff] %v2007
                %v2009 = vld [vmem:[%s1905 + $0x198] sm:$0xff]
                %2010 = vst [vmem:[%s1906 + $0x298] sm:$0xff] %v2009
                %v2011 = vld [vmem:[%s1905 + $0x1a0] sm:$0xff]
                %2012 = vst [vmem:[%s1906 + $0x2a0] sm:$0xff] %v2011
                %v2013 = vld [vmem:[%s1905 + $0x1a8] sm:$0xff]
                %2014 = vst [vmem:[%s1906 + $0x2a8] sm:$0xff] %v2013
                %v2015 = vld [vmem:[%s1905 + $0x1b0] sm:$0xff]
                %2016 = vst [vmem:[%s1906 + $0x2b0] sm:$0xff] %v2015
                %v2017 = vld [vmem:[%s1905 + $0x1b8] sm:$0xff]
                %2018 = vst [vmem:[%s1906 + $0x2b8] sm:$0xff] %v2017
                %v2019 = vld [vmem:[%s1905 + $0x1c0] sm:$0xff]
                %2020 = vst [vmem:[%s1906 + $0x2c0] sm:$0xff] %v2019
                %v2021 = vld [vmem:[%s1905 + $0x1c8] sm:$0xff]
                %2022 = vst [vmem:[%s1906 + $0x2c8] sm:$0xff] %v2021
                %v2023 = vld [vmem:[%s1905 + $0x1d0] sm:$0xff]
                %2024 = vst [vmem:[%s1906 + $0x2d0] sm:$0xff] %v2023
                %v2025 = vld [vmem:[%s1905 + $0x1d8] sm:$0xff]
                %2026 = vst [vmem:[%s1906 + $0x2d8] sm:$0xff] %v2025
                %v2027 = vld [vmem:[%s1905 + $0x1e0] sm:$0xff]
                %2028 = vst [vmem:[%s1906 + $0x2e0] sm:$0xff] %v2027
                %v2029 = vld [vmem:[%s1905 + $0x1e8] sm:$0xff]
                %2030 = vst [vmem:[%s1906 + $0x2e8] sm:$0xff] %v2029
                %v2031 = vld [vmem:[%s1905 + $0x1f0] sm:$0xff]
                %2032 = vst [vmem:[%s1906 + $0x2f0] sm:$0xff] %v2031
                %v2033 = vld [vmem:[%s1905 + $0x1f8] sm:$0xff]
                %2034 = vst [vmem:[%s1906 + $0x2f8] sm:$0xff] %v2033
              $region57: #{classification_head_forward.1} parent=51 // loop_footer
                %s1904 = sadd.s32 1, %s1900
              $region58: #{classification_head_forward.1} parent=51 // loop_footer_branch
                %1899 = sbr.rel target = $region54
              $region59: #{classification_head_forward.1} parent=51 // loop_exit
                _
            $region52: #{classification_head_forward.1} parent=47 // pred_fallthru
              _
            // Predicated region
            $region60: #{classification_head_forward.1} parent=47 // pred_check
              _
            $region61: #{classification_head_forward.1} parent=47 // pred_check_branch
              %2036 = sbr.rel target = $region63
            $region62: #{classification_head_forward.1} parent=47 // pred_region
              _
            $region63: #{classification_head_forward.1} parent=47 // pred_fallthru
              _
          $region48: #{classification_head_forward.1} parent=43 // pred_fallthru
            _
          %2037 = vnop
        $region44: #{classification_head_forward.1} parent=35 // pred_fallthru
          _
      $region36: #{classification_head_forward.1} parent=5 // pred_fallthru
        _
      %p2038 = scmp.le.s32.totalorder 2, %s11
      // Predicated region
      $region64: #{classification_head_forward.1} parent=5 // pred_check
        %p2039 = pneg %p2038
      $region65: #{classification_head_forward.1} parent=5 // pred_check_branch
        %2041 = sbr.rel (%p2039) target = $region67
      $region66: #{classification_head_forward.1} parent=5 // pred_region
        %s2042 = ssub.s32 %s11, 2
        // Predicated region
        $region68: #{classification_head_forward.1} parent=66 // pred_check
          %p2043 = pneg %p145
        $region69: #{classification_head_forward.1} parent=66 // pred_check_branch
          %2045 = sbr.rel (%p2043) target = $region71
        $region70: #{classification_head_forward.1} parent=66 // pred_region
          %s2046 = sand.u32 %s130, 1
          %s2047 = sand.u32 %s130, 1
          %s2048 = smul.addr %s2047, 512
          %s2049 = scalar_lea.vmem [#allocation4], %s2048
        $region71: #{classification_head_forward.1} parent=66 // pred_fallthru
          _
      $region67: #{classification_head_forward.1} parent=5 // pred_fallthru
        _
    $region6: #{classification_head_forward.1} parent=1 // loop_footer
      %s15 = sadd.s32 1, %s11
    $region7: #{classification_head_forward.1} parent=1 // loop_footer_branch
      %10 = sbr.rel target = $region3
    $region8: #{classification_head_forward.1} parent=1 // loop_exit
      _
    %2050 = vsyncpa [#allocation3], 1
    %s2051 = scalar_lea.sflag [#allocation3], 1
    %2052 = vsyncpa %s2051, 1

</llo_original>
